<compile_context>
chip_gen: v7x
topology: tpu7x:2x2x1
jax: 0.10.0
libtpu: 0.0.40
codegen_flags: <defaults>
</compile_context>

<pallas_src>
import jax
import jax.numpy as jnp
from jax import lax
from jax.experimental import pallas as pl
from jax.experimental.pallas import tpu as pltpu


HIDDEN = 128   # lane-aligned small stand-in for the tutorial's 256
VOCAB = 64     # input_size (vocabulary)
SEQ = 8        # number of tokens processed in one pallas_call


def encoder_gru_kernel(tok_ref, emb_ref, wih_ref, whh_ref, bih_ref, bhh_ref,
                       h0_ref, out_ref, x_scratch, gi_scratch):
    # tok_ref:     SMEM (seq,)  int32   -- token ids (scalar reads)
    # emb_ref:     VMEM (V, H)          -- full embedding table, resident
    # wih_ref:     VMEM (H, 3H)         -- W_ih^T
    # whh_ref:     VMEM (H, 3H)         -- W_hh^T
    # bih_ref/bhh_ref: VMEM (1, 3H)     -- biases
    # h0_ref:      VMEM (1, H)          -- initial hidden state
    # out_ref:     VMEM (seq, H)        -- hidden state after each step
    # x_scratch:   VMEM (seq, H)        -- gathered embeddings
    # gi_scratch:  VMEM (seq, 3H)       -- precomputed input-side gates
    seq, H = out_ref.shape

    # --- 1) Embedding gather: one dynamic row per token from the resident table.
    for t in range(seq):                                   # static, seq is small
        x_scratch[pl.ds(t, 1), :] = emb_ref[pl.ds(tok_ref[t], 1), :]

    # --- 2) Input projection hoisted out of the recurrence: one M=seq matmul.
    gi_scratch[...] = (
        jnp.dot(x_scratch[...], wih_ref[...],
                preferred_element_type=jnp.float32)
        + bih_ref[...])                                    # (seq, 3H)

    # --- 3) Sequential GRU recurrence: only h @ W_hh^T is truly serial.
    def step(t, h):
        gi = gi_scratch[pl.ds(t, 1), :]                    # (1, 3H)
        gh = jnp.dot(h, whh_ref[...],
                     preferred_element_type=jnp.float32) + bhh_ref[...]
        # H is a multiple of 128 -> each gate slice is a whole lane group.
        r = jax.nn.sigmoid(gi[:, 0:H] + gh[:, 0:H])
        z = jax.nn.sigmoid(gi[:, H:2 * H] + gh[:, H:2 * H])
        n = jnp.tanh(gi[:, 2 * H:3 * H] + r * gh[:, 2 * H:3 * H])
        h_new = n + z * (h - n)                            # == (1-z)*n + z*h
        out_ref[pl.ds(t, 1), :] = h_new
        return h_new

    lax.fori_loop(0, seq, step, h0_ref[...], unroll=True)


def encoder_rnn_forward(tokens, hidden, params):
    """tokens: int32 (seq,);  hidden: (1, 1, H) float32.

    Applies the EncoderRNN forward once per token (the whole loop lives inside
    one pallas_call invocation).  Returns (output, hidden):
      output: (seq, 1, H)  -- hidden state after each step (seq=1 reproduces
                              the original single-token forward exactly)
      hidden: (1, 1, H)    -- final hidden state
    """
    vocab, H = params["emb"].shape
    seq = tokens.shape[0]

    # OOB token ids would read arbitrary VMEM rows; clamp cheaply.
    # (Semantic difference: PyTorch would raise for out-of-range indices.)
    tokens = jnp.clip(tokens.astype(jnp.int32), 0, vocab - 1)
    h0 = hidden.reshape(1, H).astype(jnp.float32)

    outs = pl.pallas_call(
        encoder_gru_kernel,
        out_shape=jax.ShapeDtypeStruct((seq, H), jnp.float32),
        in_specs=[
            pl.BlockSpec(memory_space=pltpu.MemorySpace.SMEM),   # tokens
            pl.BlockSpec(memory_space=pltpu.MemorySpace.VMEM),   # emb (V, H)
            pl.BlockSpec(memory_space=pltpu.MemorySpace.VMEM),   # W_ih^T
            pl.BlockSpec(memory_space=pltpu.MemorySpace.VMEM),   # W_hh^T
            pl.BlockSpec(memory_space=pltpu.MemorySpace.VMEM),   # b_ih
            pl.BlockSpec(memory_space=pltpu.MemorySpace.VMEM),   # b_hh
            pl.BlockSpec(memory_space=pltpu.MemorySpace.VMEM),   # h0
        ],
        out_specs=pl.BlockSpec(memory_space=pltpu.MemorySpace.VMEM),
        scratch_shapes=[
            pltpu.VMEM((seq, H), jnp.float32),        # gathered embeddings
            pltpu.VMEM((seq, 3 * H), jnp.float32),    # precomputed gi
        ],
    )(tokens, params["emb"], params["w_ih_t"], params["w_hh_t"],
      params["b_ih"], params["b_hh"], h0)

    return outs.reshape(seq, 1, H), outs[-1].reshape(1, 1, H)


def init_params(key, vocab, hidden):
    """Parameters matching nn.Embedding + nn.GRU, stored kernel-ready:
    weights pre-transposed to (H, 3H), biases as (1, 3H), embedding (V, H).
    """
    k_emb, k_wih, k_whh, k_bih, k_bhh = jax.random.split(key, 5)
    bound = 1.0 / jnp.sqrt(hidden)
    w_ih = jax.random.uniform(k_wih, (3 * hidden, hidden), jnp.float32,
                              -bound, bound)
    w_hh = jax.random.uniform(k_whh, (3 * hidden, hidden), jnp.float32,
                              -bound, bound)
    return {
        "emb": jax.random.normal(k_emb, (vocab, hidden), jnp.float32),
        "w_ih_t": jnp.transpose(w_ih),            # (H, 3H), transposed once
        "w_hh_t": jnp.transpose(w_hh),            # (H, 3H)
        "b_ih": jax.random.uniform(k_bih, (1, 3 * hidden), jnp.float32,
                                   -bound, bound),
        "b_hh": jax.random.uniform(k_bhh, (1, 3 * hidden), jnp.float32,
                                   -bound, bound),
    }


def reference_forward(tokens, hidden, params):
    """Pure-JAX reference: the original per-token PyTorch forward, step by step."""
    H = params["emb"].shape[-1]
    h = hidden.reshape(1, H)
    outs = []
    for t in range(tokens.shape[0]):
        x = params["emb"][tokens[t]].reshape(1, H)
        gi = x @ params["w_ih_t"] + params["b_ih"]
        gh = h @ params["w_hh_t"] + params["b_hh"]
        r = jax.nn.sigmoid(gi[:, 0:H] + gh[:, 0:H])
        z = jax.nn.sigmoid(gi[:, H:2 * H] + gh[:, H:2 * H])
        n = jnp.tanh(gi[:, 2 * H:3 * H] + r * gh[:, 2 * H:3 * H])
        h = (1.0 - z) * n + z * h
        outs.append(h)
    out = jnp.concatenate(outs, axis=0).reshape(-1, 1, H)
    return out, h.reshape(1, 1, H)


if __name__ == "__main__":
    key = jax.random.PRNGKey(0)
    k_params, k_tok, k_hid = jax.random.split(key, 3)

    params = init_params(k_params, VOCAB, HIDDEN)
    tokens = jax.random.randint(k_tok, (SEQ,), 0, VOCAB, dtype=jnp.int32)
    hidden = jax.random.normal(k_hid, (1, 1, HIDDEN), jnp.float32)

    out, h_new = encoder_rnn_forward(tokens, hidden, params)
    out, h_new = jax.block_until_ready((out, h_new))

    # Correctness check against the pure-JAX reference of the PyTorch module.
    ref_out, ref_h = reference_forward(tokens, hidden, params)
    assert out.shape == (SEQ, 1, HIDDEN) and h_new.shape == (1, 1, HIDDEN)
    assert jnp.allclose(out, ref_out, atol=1e-4, rtol=1e-4), "output mismatch"
    assert jnp.allclose(h_new, ref_h, atol=1e-4, rtol=1e-4), "hidden mismatch"

    print("KERNEL_OK")
</pallas_src>

<mosaic_0001>
module attributes {stable_mosaic.version = 11 : i64} {
  func.func @encoder_gru_kernel(%arg0: memref<8xi32, #tpu.memory_space<smem>>, %arg1: memref<64x128xf32, #tpu.memory_space<vmem>>, %arg2: memref<128x384xf32, #tpu.memory_space<vmem>>, %arg3: memref<128x384xf32, #tpu.memory_space<vmem>>, %arg4: memref<1x384xf32, #tpu.memory_space<vmem>>, %arg5: memref<1x384xf32, #tpu.memory_space<vmem>>, %arg6: memref<1x128xf32, #tpu.memory_space<vmem>>, %arg7: memref<8x128xf32, #tpu.memory_space<vmem>>, %arg8: memref<8x128xf32, #tpu.memory_space<vmem>>, %arg9: memref<8x384xf32, #tpu.memory_space<vmem>>) attributes {dimension_semantics = [], scalar_prefetch = 0 : i64, scratch_operands = 2 : i64, tpu.core_type = #tpu.core_type<tc>} {
    %c0 = arith.constant 0 : index
    %0 = memref.load %arg0[%c0] : memref<8xi32, #tpu.memory_space<smem>>
    %1 = arith.index_cast %0 : i32 to index
    %c0_0 = arith.constant 0 : index
    %2 = vector.load %arg1[%1, %c0_0] : memref<64x128xf32, #tpu.memory_space<vmem>>, vector<1x128xf32>
    %c0_1 = arith.constant 0 : index
    %c0_2 = arith.constant 0 : index
    %3 = vector.load %arg8[%c0_1, %c0_2] : memref<8x128xf32, #tpu.memory_space<vmem>>, vector<1x128xf32>
    tpu.vector_store %arg8[%c0_1, %c0_2], %2 {strides = array<i32>} : memref<8x128xf32, #tpu.memory_space<vmem>>, vector<1x128xf32>,
    %c1 = arith.constant 1 : index
    %4 = memref.load %arg0[%c1] : memref<8xi32, #tpu.memory_space<smem>>
    %5 = arith.index_cast %4 : i32 to index
    %c0_3 = arith.constant 0 : index
    %6 = vector.load %arg1[%5, %c0_3] : memref<64x128xf32, #tpu.memory_space<vmem>>, vector<1x128xf32>
    %c1_4 = arith.constant 1 : index
    %c0_5 = arith.constant 0 : index
    %7 = vector.load %arg8[%c1_4, %c0_5] : memref<8x128xf32, #tpu.memory_space<vmem>>, vector<1x128xf32>
    tpu.vector_store %arg8[%c1_4, %c0_5], %6 {strides = array<i32>} : memref<8x128xf32, #tpu.memory_space<vmem>>, vector<1x128xf32>,
    %c2 = arith.constant 2 : index
    %8 = memref.load %arg0[%c2] : memref<8xi32, #tpu.memory_space<smem>>
    %9 = arith.index_cast %8 : i32 to index
    %c0_6 = arith.constant 0 : index
    %10 = vector.load %arg1[%9, %c0_6] : memref<64x128xf32, #tpu.memory_space<vmem>>, vector<1x128xf32>
    %c2_7 = arith.constant 2 : index
    %c0_8 = arith.constant 0 : index
    %11 = vector.load %arg8[%c2_7, %c0_8] : memref<8x128xf32, #tpu.memory_space<vmem>>, vector<1x128xf32>
    tpu.vector_store %arg8[%c2_7, %c0_8], %10 {strides = array<i32>} : memref<8x128xf32, #tpu.memory_space<vmem>>, vector<1x128xf32>,
    %c3 = arith.constant 3 : index
    %12 = memref.load %arg0[%c3] : memref<8xi32, #tpu.memory_space<smem>>
    %13 = arith.index_cast %12 : i32 to index
    %c0_9 = arith.constant 0 : index
    %14 = vector.load %arg1[%13, %c0_9] : memref<64x128xf32, #tpu.memory_space<vmem>>, vector<1x128xf32>
    %c3_10 = arith.constant 3 : index
    %c0_11 = arith.constant 0 : index
    %15 = vector.load %arg8[%c3_10, %c0_11] : memref<8x128xf32, #tpu.memory_space<vmem>>, vector<1x128xf32>
    tpu.vector_store %arg8[%c3_10, %c0_11], %14 {strides = array<i32>} : memref<8x128xf32, #tpu.memory_space<vmem>>, vector<1x128xf32>,
    %c4 = arith.constant 4 : index
    %16 = memref.load %arg0[%c4] : memref<8xi32, #tpu.memory_space<smem>>
    %17 = arith.index_cast %16 : i32 to index
    %c0_12 = arith.constant 0 : index
    %18 = vector.load %arg1[%17, %c0_12] : memref<64x128xf32, #tpu.memory_space<vmem>>, vector<1x128xf32>
    %c4_13 = arith.constant 4 : index
    %c0_14 = arith.constant 0 : index
    %19 = vector.load %arg8[%c4_13, %c0_14] : memref<8x128xf32, #tpu.memory_space<vmem>>, vector<1x128xf32>
    tpu.vector_store %arg8[%c4_13, %c0_14], %18 {strides = array<i32>} : memref<8x128xf32, #tpu.memory_space<vmem>>, vector<1x128xf32>,
    %c5 = arith.constant 5 : index
    %20 = memref.load %arg0[%c5] : memref<8xi32, #tpu.memory_space<smem>>
    %21 = arith.index_cast %20 : i32 to index
    %c0_15 = arith.constant 0 : index
    %22 = vector.load %arg1[%21, %c0_15] : memref<64x128xf32, #tpu.memory_space<vmem>>, vector<1x128xf32>
    %c5_16 = arith.constant 5 : index
    %c0_17 = arith.constant 0 : index
    %23 = vector.load %arg8[%c5_16, %c0_17] : memref<8x128xf32, #tpu.memory_space<vmem>>, vector<1x128xf32>
    tpu.vector_store %arg8[%c5_16, %c0_17], %22 {strides = array<i32>} : memref<8x128xf32, #tpu.memory_space<vmem>>, vector<1x128xf32>,
    %c6 = arith.constant 6 : index
    %24 = memref.load %arg0[%c6] : memref<8xi32, #tpu.memory_space<smem>>
    %25 = arith.index_cast %24 : i32 to index
    %c0_18 = arith.constant 0 : index
    %26 = vector.load %arg1[%25, %c0_18] : memref<64x128xf32, #tpu.memory_space<vmem>>, vector<1x128xf32>
    %c6_19 = arith.constant 6 : index
    %c0_20 = arith.constant 0 : index
    %27 = vector.load %arg8[%c6_19, %c0_20] : memref<8x128xf32, #tpu.memory_space<vmem>>, vector<1x128xf32>
    tpu.vector_store %arg8[%c6_19, %c0_20], %26 {strides = array<i32>} : memref<8x128xf32, #tpu.memory_space<vmem>>, vector<1x128xf32>,
    %c7 = arith.constant 7 : index
    %28 = memref.load %arg0[%c7] : memref<8xi32, #tpu.memory_space<smem>>
    %29 = arith.index_cast %28 : i32 to index
    %c0_21 = arith.constant 0 : index
    %30 = vector.load %arg1[%29, %c0_21] : memref<64x128xf32, #tpu.memory_space<vmem>>, vector<1x128xf32>
    %c7_22 = arith.constant 7 : index
    %c0_23 = arith.constant 0 : index
    %31 = vector.load %arg8[%c7_22, %c0_23] : memref<8x128xf32, #tpu.memory_space<vmem>>, vector<1x128xf32>
    tpu.vector_store %arg8[%c7_22, %c0_23], %30 {strides = array<i32>} : memref<8x128xf32, #tpu.memory_space<vmem>>, vector<1x128xf32>,
    %c0_24 = arith.constant 0 : index
    %c0_25 = arith.constant 0 : index
    %32 = vector.load %arg8[%c0_24, %c0_25] : memref<8x128xf32, #tpu.memory_space<vmem>>, vector<8x128xf32>
    %c0_26 = arith.constant 0 : index
    %c0_27 = arith.constant 0 : index
    %33 = vector.load %arg2[%c0_26, %c0_27] : memref<128x384xf32, #tpu.memory_space<vmem>>, vector<128x384xf32>
    %cst = arith.constant dense<0.000000e+00> : vector<8x384xf32>
    %34 = tpu.matmul %32, %33, %cst {dimension_numbers = #tpu.dot_dimension_numbers<[1], [0], [0], [1], [0, 0, 1, 1], [], []>} : vector<8x128xf32>, vector<128x384xf32>, vector<8x384xf32> -> vector<8x384xf32>
    %c0_28 = arith.constant 0 : index
    %c0_29 = arith.constant 0 : index
    %35 = vector.load %arg4[%c0_28, %c0_29] : memref<1x384xf32, #tpu.memory_space<vmem>>, vector<1x384xf32>
    %36 = vector.broadcast %35 : vector<1x384xf32> to vector<8x384xf32>
    %37 = arith.addf %34, %36 : vector<8x384xf32>
    %c0_30 = arith.constant 0 : index
    %c0_31 = arith.constant 0 : index
    %38 = vector.load %arg9[%c0_30, %c0_31] : memref<8x384xf32, #tpu.memory_space<vmem>>, vector<8x384xf32>
    tpu.vector_store %arg9[%c0_30, %c0_31], %37 {strides = array<i32>} : memref<8x384xf32, #tpu.memory_space<vmem>>, vector<8x384xf32>,
    %c0_32 = arith.constant 0 : index
    %c0_33 = arith.constant 0 : index
    %39 = vector.load %arg6[%c0_32, %c0_33] : memref<1x128xf32, #tpu.memory_space<vmem>>, vector<1x128xf32>
    %c0_i32 = arith.constant 0 : i32
    %40 = arith.index_cast %c0_i32 : i32 to index
    %c0_34 = arith.constant 0 : index
    %41 = vector.load %arg9[%40, %c0_34] : memref<8x384xf32, #tpu.memory_space<vmem>>, vector<1x384xf32>
    %c0_35 = arith.constant 0 : index
    %c0_36 = arith.constant 0 : index
    %42 = vector.load %arg3[%c0_35, %c0_36] : memref<128x384xf32, #tpu.memory_space<vmem>>, vector<128x384xf32>
    %cst_37 = arith.constant dense<0.000000e+00> : vector<1x384xf32>
    %43 = tpu.matmul %39, %42, %cst_37 {dimension_numbers = #tpu.dot_dimension_numbers<[1], [0], [0], [1], [0, 0, 1, 1], [], []>} : vector<1x128xf32>, vector<128x384xf32>, vector<1x384xf32> -> vector<1x384xf32>
    %c0_38 = arith.constant 0 : index
    %c0_39 = arith.constant 0 : index
    %44 = vector.load %arg5[%c0_38, %c0_39] : memref<1x384xf32, #tpu.memory_space<vmem>>, vector<1x384xf32>
    %45 = arith.addf %43, %44 : vector<1x384xf32>
    %46 = vector.extract_strided_slice %41 {offsets = [0, 0], sizes = [1, 128], strides = [1, 1]} : vector<1x384xf32> to vector<1x128xf32>
    %47 = vector.extract_strided_slice %45 {offsets = [0, 0], sizes = [1, 128], strides = [1, 1]} : vector<1x384xf32> to vector<1x128xf32>
    %48 = arith.addf %46, %47 : vector<1x128xf32>
    %49 = arith.negf %48 : vector<1x128xf32>
    %50 = math.exp %49 : vector<1x128xf32>
    %cst_40 = arith.constant 1.000000e+00 : f32
    %51 = vector.broadcast %cst_40 : f32 to vector<1x128xf32>
    %52 = arith.addf %51, %50 : vector<1x128xf32>
    %53 = arith.divf %51, %52 : vector<1x128xf32>
    %54 = vector.extract_strided_slice %41 {offsets = [0, 128], sizes = [1, 128], strides = [1, 1]} : vector<1x384xf32> to vector<1x128xf32>
    %55 = vector.extract_strided_slice %45 {offsets = [0, 128], sizes = [1, 128], strides = [1, 1]} : vector<1x384xf32> to vector<1x128xf32>
    %56 = arith.addf %54, %55 : vector<1x128xf32>
    %57 = arith.negf %56 : vector<1x128xf32>
    %58 = math.exp %57 : vector<1x128xf32>
    %cst_41 = arith.constant 1.000000e+00 : f32
    %59 = vector.broadcast %cst_41 : f32 to vector<1x128xf32>
    %60 = arith.addf %59, %58 : vector<1x128xf32>
    %61 = arith.divf %59, %60 : vector<1x128xf32>
    %62 = vector.extract_strided_slice %41 {offsets = [0, 256], sizes = [1, 128], strides = [1, 1]} : vector<1x384xf32> to vector<1x128xf32>
    %63 = vector.extract_strided_slice %45 {offsets = [0, 256], sizes = [1, 128], strides = [1, 1]} : vector<1x384xf32> to vector<1x128xf32>
    %64 = arith.mulf %53, %63 : vector<1x128xf32>
    %65 = arith.addf %62, %64 : vector<1x128xf32>
    %66 = math.tanh %65 : vector<1x128xf32>
    %67 = arith.subf %39, %66 : vector<1x128xf32>
    %68 = arith.mulf %61, %67 : vector<1x128xf32>
    %69 = arith.addf %66, %68 : vector<1x128xf32>
    %70 = arith.index_cast %c0_i32 : i32 to index
    %c0_42 = arith.constant 0 : index
    %71 = vector.load %arg7[%70, %c0_42] : memref<8x128xf32, #tpu.memory_space<vmem>>, vector<1x128xf32>
    tpu.vector_store %arg7[%70, %c0_42], %69 {strides = array<i32>} : memref<8x128xf32, #tpu.memory_space<vmem>>, vector<1x128xf32>,
    %c1_i32 = arith.constant 1 : i32
    %72 = arith.index_cast %c1_i32 : i32 to index
    %c0_43 = arith.constant 0 : index
    %73 = vector.load %arg9[%72, %c0_43] : memref<8x384xf32, #tpu.memory_space<vmem>>, vector<1x384xf32>
    %c0_44 = arith.constant 0 : index
    %c0_45 = arith.constant 0 : index
    %74 = vector.load %arg3[%c0_44, %c0_45] : memref<128x384xf32, #tpu.memory_space<vmem>>, vector<128x384xf32>
    %cst_46 = arith.constant dense<0.000000e+00> : vector<1x384xf32>
    %75 = tpu.matmul %69, %74, %cst_46 {dimension_numbers = #tpu.dot_dimension_numbers<[1], [0], [0], [1], [0, 0, 1, 1], [], []>} : vector<1x128xf32>, vector<128x384xf32>, vector<1x384xf32> -> vector<1x384xf32>
    %c0_47 = arith.constant 0 : index
    %c0_48 = arith.constant 0 : index
    %76 = vector.load %arg5[%c0_47, %c0_48] : memref<1x384xf32, #tpu.memory_space<vmem>>, vector<1x384xf32>
    %77 = arith.addf %75, %76 : vector<1x384xf32>
    %78 = vector.extract_strided_slice %73 {offsets = [0, 0], sizes = [1, 128], strides = [1, 1]} : vector<1x384xf32> to vector<1x128xf32>
    %79 = vector.extract_strided_slice %77 {offsets = [0, 0], sizes = [1, 128], strides = [1, 1]} : vector<1x384xf32> to vector<1x128xf32>
    %80 = arith.addf %78, %79 : vector<1x128xf32>
    %81 = arith.negf %80 : vector<1x128xf32>
    %82 = math.exp %81 : vector<1x128xf32>
    %cst_49 = arith.constant 1.000000e+00 : f32
    %83 = vector.broadcast %cst_49 : f32 to vector<1x128xf32>
    %84 = arith.addf %83, %82 : vector<1x128xf32>
    %85 = arith.divf %83, %84 : vector<1x128xf32>
    %86 = vector.extract_strided_slice %73 {offsets = [0, 128], sizes = [1, 128], strides = [1, 1]} : vector<1x384xf32> to vector<1x128xf32>
    %87 = vector.extract_strided_slice %77 {offsets = [0, 128], sizes = [1, 128], strides = [1, 1]} : vector<1x384xf32> to vector<1x128xf32>
    %88 = arith.addf %86, %87 : vector<1x128xf32>
    %89 = arith.negf %88 : vector<1x128xf32>
    %90 = math.exp %89 : vector<1x128xf32>
    %cst_50 = arith.constant 1.000000e+00 : f32
    %91 = vector.broadcast %cst_50 : f32 to vector<1x128xf32>
    %92 = arith.addf %91, %90 : vector<1x128xf32>
    %93 = arith.divf %91, %92 : vector<1x128xf32>
    %94 = vector.extract_strided_slice %73 {offsets = [0, 256], sizes = [1, 128], strides = [1, 1]} : vector<1x384xf32> to vector<1x128xf32>
    %95 = vector.extract_strided_slice %77 {offsets = [0, 256], sizes = [1, 128], strides = [1, 1]} : vector<1x384xf32> to vector<1x128xf32>
    %96 = arith.mulf %85, %95 : vector<1x128xf32>
    %97 = arith.addf %94, %96 : vector<1x128xf32>
    %98 = math.tanh %97 : vector<1x128xf32>
    %99 = arith.subf %69, %98 : vector<1x128xf32>
    %100 = arith.mulf %93, %99 : vector<1x128xf32>
    %101 = arith.addf %98, %100 : vector<1x128xf32>
    %102 = arith.index_cast %c1_i32 : i32 to index
    %c0_51 = arith.constant 0 : index
    %103 = vector.load %arg7[%102, %c0_51] : memref<8x128xf32, #tpu.memory_space<vmem>>, vector<1x128xf32>
    tpu.vector_store %arg7[%102, %c0_51], %101 {strides = array<i32>} : memref<8x128xf32, #tpu.memory_space<vmem>>, vector<1x128xf32>,
    %c2_i32 = arith.constant 2 : i32
    %104 = arith.index_cast %c2_i32 : i32 to index
    %c0_52 = arith.constant 0 : index
    %105 = vector.load %arg9[%104, %c0_52] : memref<8x384xf32, #tpu.memory_space<vmem>>, vector<1x384xf32>
    %c0_53 = arith.constant 0 : index
    %c0_54 = arith.constant 0 : index
    %106 = vector.load %arg3[%c0_53, %c0_54] : memref<128x384xf32, #tpu.memory_space<vmem>>, vector<128x384xf32>
    %cst_55 = arith.constant dense<0.000000e+00> : vector<1x384xf32>
    %107 = tpu.matmul %101, %106, %cst_55 {dimension_numbers = #tpu.dot_dimension_numbers<[1], [0], [0], [1], [0, 0, 1, 1], [], []>} : vector<1x128xf32>, vector<128x384xf32>, vector<1x384xf32> -> vector<1x384xf32>
    %c0_56 = arith.constant 0 : index
    %c0_57 = arith.constant 0 : index
    %108 = vector.load %arg5[%c0_56, %c0_57] : memref<1x384xf32, #tpu.memory_space<vmem>>, vector<1x384xf32>
    %109 = arith.addf %107, %108 : vector<1x384xf32>
    %110 = vector.extract_strided_slice %105 {offsets = [0, 0], sizes = [1, 128], strides = [1, 1]} : vector<1x384xf32> to vector<1x128xf32>
    %111 = vector.extract_strided_slice %109 {offsets = [0, 0], sizes = [1, 128], strides = [1, 1]} : vector<1x384xf32> to vector<1x128xf32>
    %112 = arith.addf %110, %111 : vector<1x128xf32>
    %113 = arith.negf %112 : vector<1x128xf32>
    %114 = math.exp %113 : vector<1x128xf32>
    %cst_58 = arith.constant 1.000000e+00 : f32
    %115 = vector.broadcast %cst_58 : f32 to vector<1x128xf32>
    %116 = arith.addf %115, %114 : vector<1x128xf32>
    %117 = arith.divf %115, %116 : vector<1x128xf32>
    %118 = vector.extract_strided_slice %105 {offsets = [0, 128], sizes = [1, 128], strides = [1, 1]} : vector<1x384xf32> to vector<1x128xf32>
    %119 = vector.extract_strided_slice %109 {offsets = [0, 128], sizes = [1, 128], strides = [1, 1]} : vector<1x384xf32> to vector<1x128xf32>
    %120 = arith.addf %118, %119 : vector<1x128xf32>
    %121 = arith.negf %120 : vector<1x128xf32>
    %122 = math.exp %121 : vector<1x128xf32>
    %cst_59 = arith.constant 1.000000e+00 : f32
    %123 = vector.broadcast %cst_59 : f32 to vector<1x128xf32>
    %124 = arith.addf %123, %122 : vector<1x128xf32>
    %125 = arith.divf %123, %124 : vector<1x128xf32>
    %126 = vector.extract_strided_slice %105 {offsets = [0, 256], sizes = [1, 128], strides = [1, 1]} : vector<1x384xf32> to vector<1x128xf32>
    %127 = vector.extract_strided_slice %109 {offsets = [0, 256], sizes = [1, 128], strides = [1, 1]} : vector<1x384xf32> to vector<1x128xf32>
    %128 = arith.mulf %117, %127 : vector<1x128xf32>
    %129 = arith.addf %126, %128 : vector<1x128xf32>
    %130 = math.tanh %129 : vector<1x128xf32>
    %131 = arith.subf %101, %130 : vector<1x128xf32>
    %132 = arith.mulf %125, %131 : vector<1x128xf32>
    %133 = arith.addf %130, %132 : vector<1x128xf32>
    %134 = arith.index_cast %c2_i32 : i32 to index
    %c0_60 = arith.constant 0 : index
    %135 = vector.load %arg7[%134, %c0_60] : memref<8x128xf32, #tpu.memory_space<vmem>>, vector<1x128xf32>
    tpu.vector_store %arg7[%134, %c0_60], %133 {strides = array<i32>} : memref<8x128xf32, #tpu.memory_space<vmem>>, vector<1x128xf32>,
    %c3_i32 = arith.constant 3 : i32
    %136 = arith.index_cast %c3_i32 : i32 to index
    %c0_61 = arith.constant 0 : index
    %137 = vector.load %arg9[%136, %c0_61] : memref<8x384xf32, #tpu.memory_space<vmem>>, vector<1x384xf32>
    %c0_62 = arith.constant 0 : index
    %c0_63 = arith.constant 0 : index
    %138 = vector.load %arg3[%c0_62, %c0_63] : memref<128x384xf32, #tpu.memory_space<vmem>>, vector<128x384xf32>
    %cst_64 = arith.constant dense<0.000000e+00> : vector<1x384xf32>
    %139 = tpu.matmul %133, %138, %cst_64 {dimension_numbers = #tpu.dot_dimension_numbers<[1], [0], [0], [1], [0, 0, 1, 1], [], []>} : vector<1x128xf32>, vector<128x384xf32>, vector<1x384xf32> -> vector<1x384xf32>
    %c0_65 = arith.constant 0 : index
    %c0_66 = arith.constant 0 : index
    %140 = vector.load %arg5[%c0_65, %c0_66] : memref<1x384xf32, #tpu.memory_space<vmem>>, vector<1x384xf32>
    %141 = arith.addf %139, %140 : vector<1x384xf32>
    %142 = vector.extract_strided_slice %137 {offsets = [0, 0], sizes = [1, 128], strides = [1, 1]} : vector<1x384xf32> to vector<1x128xf32>
    %143 = vector.extract_strided_slice %141 {offsets = [0, 0], sizes = [1, 128], strides = [1, 1]} : vector<1x384xf32> to vector<1x128xf32>
    %144 = arith.addf %142, %143 : vector<1x128xf32>
    %145 = arith.negf %144 : vector<1x128xf32>
    %146 = math.exp %145 : vector<1x128xf32>
    %cst_67 = arith.constant 1.000000e+00 : f32
    %147 = vector.broadcast %cst_67 : f32 to vector<1x128xf32>
    %148 = arith.addf %147, %146 : vector<1x128xf32>
    %149 = arith.divf %147, %148 : vector<1x128xf32>
    %150 = vector.extract_strided_slice %137 {offsets = [0, 128], sizes = [1, 128], strides = [1, 1]} : vector<1x384xf32> to vector<1x128xf32>
    %151 = vector.extract_strided_slice %141 {offsets = [0, 128], sizes = [1, 128], strides = [1, 1]} : vector<1x384xf32> to vector<1x128xf32>
    %152 = arith.addf %150, %151 : vector<1x128xf32>
    %153 = arith.negf %152 : vector<1x128xf32>
    %154 = math.exp %153 : vector<1x128xf32>
    %cst_68 = arith.constant 1.000000e+00 : f32
    %155 = vector.broadcast %cst_68 : f32 to vector<1x128xf32>
    %156 = arith.addf %155, %154 : vector<1x128xf32>
    %157 = arith.divf %155, %156 : vector<1x128xf32>
    %158 = vector.extract_strided_slice %137 {offsets = [0, 256], sizes = [1, 128], strides = [1, 1]} : vector<1x384xf32> to vector<1x128xf32>
    %159 = vector.extract_strided_slice %141 {offsets = [0, 256], sizes = [1, 128], strides = [1, 1]} : vector<1x384xf32> to vector<1x128xf32>
    %160 = arith.mulf %149, %159 : vector<1x128xf32>
    %161 = arith.addf %158, %160 : vector<1x128xf32>
    %162 = math.tanh %161 : vector<1x128xf32>
    %163 = arith.subf %133, %162 : vector<1x128xf32>
    %164 = arith.mulf %157, %163 : vector<1x128xf32>
    %165 = arith.addf %162, %164 : vector<1x128xf32>
    %166 = arith.index_cast %c3_i32 : i32 to index
    %c0_69 = arith.constant 0 : index
    %167 = vector.load %arg7[%166, %c0_69] : memref<8x128xf32, #tpu.memory_space<vmem>>, vector<1x128xf32>
    tpu.vector_store %arg7[%166, %c0_69], %165 {strides = array<i32>} : memref<8x128xf32, #tpu.memory_space<vmem>>, vector<1x128xf32>,
    %c4_i32 = arith.constant 4 : i32
    %168 = arith.index_cast %c4_i32 : i32 to index
    %c0_70 = arith.constant 0 : index
    %169 = vector.load %arg9[%168, %c0_70] : memref<8x384xf32, #tpu.memory_space<vmem>>, vector<1x384xf32>
    %c0_71 = arith.constant 0 : index
    %c0_72 = arith.constant 0 : index
    %170 = vector.load %arg3[%c0_71, %c0_72] : memref<128x384xf32, #tpu.memory_space<vmem>>, vector<128x384xf32>
    %cst_73 = arith.constant dense<0.000000e+00> : vector<1x384xf32>
    %171 = tpu.matmul %165, %170, %cst_73 {dimension_numbers = #tpu.dot_dimension_numbers<[1], [0], [0], [1], [0, 0, 1, 1], [], []>} : vector<1x128xf32>, vector<128x384xf32>, vector<1x384xf32> -> vector<1x384xf32>
    %c0_74 = arith.constant 0 : index
    %c0_75 = arith.constant 0 : index
    %172 = vector.load %arg5[%c0_74, %c0_75] : memref<1x384xf32, #tpu.memory_space<vmem>>, vector<1x384xf32>
    %173 = arith.addf %171, %172 : vector<1x384xf32>
    %174 = vector.extract_strided_slice %169 {offsets = [0, 0], sizes = [1, 128], strides = [1, 1]} : vector<1x384xf32> to vector<1x128xf32>
    %175 = vector.extract_strided_slice %173 {offsets = [0, 0], sizes = [1, 128], strides = [1, 1]} : vector<1x384xf32> to vector<1x128xf32>
    %176 = arith.addf %174, %175 : vector<1x128xf32>
    %177 = arith.negf %176 : vector<1x128xf32>
    %178 = math.exp %177 : vector<1x128xf32>
    %cst_76 = arith.constant 1.000000e+00 : f32
    %179 = vector.broadcast %cst_76 : f32 to vector<1x128xf32>
    %180 = arith.addf %179, %178 : vector<1x128xf32>
    %181 = arith.divf %179, %180 : vector<1x128xf32>
    %182 = vector.extract_strided_slice %169 {offsets = [0, 128], sizes = [1, 128], strides = [1, 1]} : vector<1x384xf32> to vector<1x128xf32>
    %183 = vector.extract_strided_slice %173 {offsets = [0, 128], sizes = [1, 128], strides = [1, 1]} : vector<1x384xf32> to vector<1x128xf32>
    %184 = arith.addf %182, %183 : vector<1x128xf32>
    %185 = arith.negf %184 : vector<1x128xf32>
    %186 = math.exp %185 : vector<1x128xf32>
    %cst_77 = arith.constant 1.000000e+00 : f32
    %187 = vector.broadcast %cst_77 : f32 to vector<1x128xf32>
    %188 = arith.addf %187, %186 : vector<1x128xf32>
    %189 = arith.divf %187, %188 : vector<1x128xf32>
    %190 = vector.extract_strided_slice %169 {offsets = [0, 256], sizes = [1, 128], strides = [1, 1]} : vector<1x384xf32> to vector<1x128xf32>
    %191 = vector.extract_strided_slice %173 {offsets = [0, 256], sizes = [1, 128], strides = [1, 1]} : vector<1x384xf32> to vector<1x128xf32>
    %192 = arith.mulf %181, %191 : vector<1x128xf32>
    %193 = arith.addf %190, %192 : vector<1x128xf32>
    %194 = math.tanh %193 : vector<1x128xf32>
    %195 = arith.subf %165, %194 : vector<1x128xf32>
    %196 = arith.mulf %189, %195 : vector<1x128xf32>
    %197 = arith.addf %194, %196 : vector<1x128xf32>
    %198 = arith.index_cast %c4_i32 : i32 to index
    %c0_78 = arith.constant 0 : index
    %199 = vector.load %arg7[%198, %c0_78] : memref<8x128xf32, #tpu.memory_space<vmem>>, vector<1x128xf32>
    tpu.vector_store %arg7[%198, %c0_78], %197 {strides = array<i32>} : memref<8x128xf32, #tpu.memory_space<vmem>>, vector<1x128xf32>,
    %c5_i32 = arith.constant 5 : i32
    %200 = arith.index_cast %c5_i32 : i32 to index
    %c0_79 = arith.constant 0 : index
    %201 = vector.load %arg9[%200, %c0_79] : memref<8x384xf32, #tpu.memory_space<vmem>>, vector<1x384xf32>
    %c0_80 = arith.constant 0 : index
    %c0_81 = arith.constant 0 : index
    %202 = vector.load %arg3[%c0_80, %c0_81] : memref<128x384xf32, #tpu.memory_space<vmem>>, vector<128x384xf32>
    %cst_82 = arith.constant dense<0.000000e+00> : vector<1x384xf32>
    %203 = tpu.matmul %197, %202, %cst_82 {dimension_numbers = #tpu.dot_dimension_numbers<[1], [0], [0], [1], [0, 0, 1, 1], [], []>} : vector<1x128xf32>, vector<128x384xf32>, vector<1x384xf32> -> vector<1x384xf32>
    %c0_83 = arith.constant 0 : index
    %c0_84 = arith.constant 0 : index
    %204 = vector.load %arg5[%c0_83, %c0_84] : memref<1x384xf32, #tpu.memory_space<vmem>>, vector<1x384xf32>
    %205 = arith.addf %203, %204 : vector<1x384xf32>
    %206 = vector.extract_strided_slice %201 {offsets = [0, 0], sizes = [1, 128], strides = [1, 1]} : vector<1x384xf32> to vector<1x128xf32>
    %207 = vector.extract_strided_slice %205 {offsets = [0, 0], sizes = [1, 128], strides = [1, 1]} : vector<1x384xf32> to vector<1x128xf32>
    %208 = arith.addf %206, %207 : vector<1x128xf32>
    %209 = arith.negf %208 : vector<1x128xf32>
    %210 = math.exp %209 : vector<1x128xf32>
    %cst_85 = arith.constant 1.000000e+00 : f32
    %211 = vector.broadcast %cst_85 : f32 to vector<1x128xf32>
    %212 = arith.addf %211, %210 : vector<1x128xf32>
    %213 = arith.divf %211, %212 : vector<1x128xf32>
    %214 = vector.extract_strided_slice %201 {offsets = [0, 128], sizes = [1, 128], strides = [1, 1]} : vector<1x384xf32> to vector<1x128xf32>
    %215 = vector.extract_strided_slice %205 {offsets = [0, 128], sizes = [1, 128], strides = [1, 1]} : vector<1x384xf32> to vector<1x128xf32>
    %216 = arith.addf %214, %215 : vector<1x128xf32>
    %217 = arith.negf %216 : vector<1x128xf32>
    %218 = math.exp %217 : vector<1x128xf32>
    %cst_86 = arith.constant 1.000000e+00 : f32
    %219 = vector.broadcast %cst_86 : f32 to vector<1x128xf32>
    %220 = arith.addf %219, %218 : vector<1x128xf32>
    %221 = arith.divf %219, %220 : vector<1x128xf32>
    %222 = vector.extract_strided_slice %201 {offsets = [0, 256], sizes = [1, 128], strides = [1, 1]} : vector<1x384xf32> to vector<1x128xf32>
    %223 = vector.extract_strided_slice %205 {offsets = [0, 256], sizes = [1, 128], strides = [1, 1]} : vector<1x384xf32> to vector<1x128xf32>
    %224 = arith.mulf %213, %223 : vector<1x128xf32>
    %225 = arith.addf %222, %224 : vector<1x128xf32>
    %226 = math.tanh %225 : vector<1x128xf32>
    %227 = arith.subf %197, %226 : vector<1x128xf32>
    %228 = arith.mulf %221, %227 : vector<1x128xf32>
    %229 = arith.addf %226, %228 : vector<1x128xf32>
    %230 = arith.index_cast %c5_i32 : i32 to index
    %c0_87 = arith.constant 0 : index
    %231 = vector.load %arg7[%230, %c0_87] : memref<8x128xf32, #tpu.memory_space<vmem>>, vector<1x128xf32>
    tpu.vector_store %arg7[%230, %c0_87], %229 {strides = array<i32>} : memref<8x128xf32, #tpu.memory_space<vmem>>, vector<1x128xf32>,
    %c6_i32 = arith.constant 6 : i32
    %232 = arith.index_cast %c6_i32 : i32 to index
    %c0_88 = arith.constant 0 : index
    %233 = vector.load %arg9[%232, %c0_88] : memref<8x384xf32, #tpu.memory_space<vmem>>, vector<1x384xf32>
    %c0_89 = arith.constant 0 : index
    %c0_90 = arith.constant 0 : index
    %234 = vector.load %arg3[%c0_89, %c0_90] : memref<128x384xf32, #tpu.memory_space<vmem>>, vector<128x384xf32>
    %cst_91 = arith.constant dense<0.000000e+00> : vector<1x384xf32>
    %235 = tpu.matmul %229, %234, %cst_91 {dimension_numbers = #tpu.dot_dimension_numbers<[1], [0], [0], [1], [0, 0, 1, 1], [], []>} : vector<1x128xf32>, vector<128x384xf32>, vector<1x384xf32> -> vector<1x384xf32>
    %c0_92 = arith.constant 0 : index
    %c0_93 = arith.constant 0 : index
    %236 = vector.load %arg5[%c0_92, %c0_93] : memref<1x384xf32, #tpu.memory_space<vmem>>, vector<1x384xf32>
    %237 = arith.addf %235, %236 : vector<1x384xf32>
    %238 = vector.extract_strided_slice %233 {offsets = [0, 0], sizes = [1, 128], strides = [1, 1]} : vector<1x384xf32> to vector<1x128xf32>
    %239 = vector.extract_strided_slice %237 {offsets = [0, 0], sizes = [1, 128], strides = [1, 1]} : vector<1x384xf32> to vector<1x128xf32>
    %240 = arith.addf %238, %239 : vector<1x128xf32>
    %241 = arith.negf %240 : vector<1x128xf32>
    %242 = math.exp %241 : vector<1x128xf32>
    %cst_94 = arith.constant 1.000000e+00 : f32
    %243 = vector.broadcast %cst_94 : f32 to vector<1x128xf32>
    %244 = arith.addf %243, %242 : vector<1x128xf32>
    %245 = arith.divf %243, %244 : vector<1x128xf32>
    %246 = vector.extract_strided_slice %233 {offsets = [0, 128], sizes = [1, 128], strides = [1, 1]} : vector<1x384xf32> to vector<1x128xf32>
    %247 = vector.extract_strided_slice %237 {offsets = [0, 128], sizes = [1, 128], strides = [1, 1]} : vector<1x384xf32> to vector<1x128xf32>
    %248 = arith.addf %246, %247 : vector<1x128xf32>
    %249 = arith.negf %248 : vector<1x128xf32>
    %250 = math.exp %249 : vector<1x128xf32>
    %cst_95 = arith.constant 1.000000e+00 : f32
    %251 = vector.broadcast %cst_95 : f32 to vector<1x128xf32>
    %252 = arith.addf %251, %250 : vector<1x128xf32>
    %253 = arith.divf %251, %252 : vector<1x128xf32>
    %254 = vector.extract_strided_slice %233 {offsets = [0, 256], sizes = [1, 128], strides = [1, 1]} : vector<1x384xf32> to vector<1x128xf32>
    %255 = vector.extract_strided_slice %237 {offsets = [0, 256], sizes = [1, 128], strides = [1, 1]} : vector<1x384xf32> to vector<1x128xf32>
    %256 = arith.mulf %245, %255 : vector<1x128xf32>
    %257 = arith.addf %254, %256 : vector<1x128xf32>
    %258 = math.tanh %257 : vector<1x128xf32>
    %259 = arith.subf %229, %258 : vector<1x128xf32>
    %260 = arith.mulf %253, %259 : vector<1x128xf32>
    %261 = arith.addf %258, %260 : vector<1x128xf32>
    %262 = arith.index_cast %c6_i32 : i32 to index
    %c0_96 = arith.constant 0 : index
    %263 = vector.load %arg7[%262, %c0_96] : memref<8x128xf32, #tpu.memory_space<vmem>>, vector<1x128xf32>
    tpu.vector_store %arg7[%262, %c0_96], %261 {strides = array<i32>} : memref<8x128xf32, #tpu.memory_space<vmem>>, vector<1x128xf32>,
    %c7_i32 = arith.constant 7 : i32
    %264 = arith.index_cast %c7_i32 : i32 to index
    %c0_97 = arith.constant 0 : index
    %265 = vector.load %arg9[%264, %c0_97] : memref<8x384xf32, #tpu.memory_space<vmem>>, vector<1x384xf32>
    %c0_98 = arith.constant 0 : index
    %c0_99 = arith.constant 0 : index
    %266 = vector.load %arg3[%c0_98, %c0_99] : memref<128x384xf32, #tpu.memory_space<vmem>>, vector<128x384xf32>
    %cst_100 = arith.constant dense<0.000000e+00> : vector<1x384xf32>
    %267 = tpu.matmul %261, %266, %cst_100 {dimension_numbers = #tpu.dot_dimension_numbers<[1], [0], [0], [1], [0, 0, 1, 1], [], []>} : vector<1x128xf32>, vector<128x384xf32>, vector<1x384xf32> -> vector<1x384xf32>
    %c0_101 = arith.constant 0 : index
    %c0_102 = arith.constant 0 : index
    %268 = vector.load %arg5[%c0_101, %c0_102] : memref<1x384xf32, #tpu.memory_space<vmem>>, vector<1x384xf32>
    %269 = arith.addf %267, %268 : vector<1x384xf32>
    %270 = vector.extract_strided_slice %265 {offsets = [0, 0], sizes = [1, 128], strides = [1, 1]} : vector<1x384xf32> to vector<1x128xf32>
    %271 = vector.extract_strided_slice %269 {offsets = [0, 0], sizes = [1, 128], strides = [1, 1]} : vector<1x384xf32> to vector<1x128xf32>
    %272 = arith.addf %270, %271 : vector<1x128xf32>
    %273 = arith.negf %272 : vector<1x128xf32>
    %274 = math.exp %273 : vector<1x128xf32>
    %cst_103 = arith.constant 1.000000e+00 : f32
    %275 = vector.broadcast %cst_103 : f32 to vector<1x128xf32>
    %276 = arith.addf %275, %274 : vector<1x128xf32>
    %277 = arith.divf %275, %276 : vector<1x128xf32>
    %278 = vector.extract_strided_slice %265 {offsets = [0, 128], sizes = [1, 128], strides = [1, 1]} : vector<1x384xf32> to vector<1x128xf32>
    %279 = vector.extract_strided_slice %269 {offsets = [0, 128], sizes = [1, 128], strides = [1, 1]} : vector<1x384xf32> to vector<1x128xf32>
    %280 = arith.addf %278, %279 : vector<1x128xf32>
    %281 = arith.negf %280 : vector<1x128xf32>
    %282 = math.exp %281 : vector<1x128xf32>
    %cst_104 = arith.constant 1.000000e+00 : f32
    %283 = vector.broadcast %cst_104 : f32 to vector<1x128xf32>
    %284 = arith.addf %283, %282 : vector<1x128xf32>
    %285 = arith.divf %283, %284 : vector<1x128xf32>
    %286 = vector.extract_strided_slice %265 {offsets = [0, 256], sizes = [1, 128], strides = [1, 1]} : vector<1x384xf32> to vector<1x128xf32>
    %287 = vector.extract_strided_slice %269 {offsets = [0, 256], sizes = [1, 128], strides = [1, 1]} : vector<1x384xf32> to vector<1x128xf32>
    %288 = arith.mulf %277, %287 : vector<1x128xf32>
    %289 = arith.addf %286, %288 : vector<1x128xf32>
    %290 = math.tanh %289 : vector<1x128xf32>
    %291 = arith.subf %261, %290 : vector<1x128xf32>
    %292 = arith.mulf %285, %291 : vector<1x128xf32>
    %293 = arith.addf %290, %292 : vector<1x128xf32>
    %294 = arith.index_cast %c7_i32 : i32 to index
    %c0_105 = arith.constant 0 : index
    %295 = vector.load %arg7[%294, %c0_105] : memref<8x128xf32, #tpu.memory_space<vmem>>, vector<1x128xf32>
    tpu.vector_store %arg7[%294, %c0_105], %293 {strides = array<i32>} : memref<8x128xf32, #tpu.memory_space<vmem>>, vector<1x128xf32>,
    %c8_i32 = arith.constant 8 : i32
    return
  }
}

</mosaic_0001>

<llo_original>
// kernel: tpu_custom_call.1
$region0: #{tpu_custom_call.1}
  #allocation0 [shape = 'u32[]', space=smem, size = 0x4, offset = 0x4, fixed_abs, tag = 'smem constant byte address 0x4 - core index']
  #allocation1 [shape = 'u32[144,128]{1,0:T(1,128)}', space=vmem, size = 0x12000, scoped, tag = 'internal scratch']
  #allocation2 [shape = 'f32[8,128]{1,0:T(8,128)}', space=vmem, size = 0x1000, scoped, tag = 'scratch operand']
  #allocation3 [shape = 'f32[8,384]{1,0:T(8,128)}', space=vmem, size = 0x3000, scoped, tag = 'scratch operand']
  %s0 = inlined_call_operand.hbm [shape: s32[8], index: 0, kind: input, shape index: {}]
  %s1 = inlined_call_operand.hbm [shape: f32[64,128], index: 1, kind: input, shape index: {}]
  %s2 = inlined_call_operand.hbm [shape: f32[128,384], index: 2, kind: input, shape index: {}]
  %s3 = inlined_call_operand.hbm [shape: f32[128,384], index: 3, kind: input, shape index: {}]
  %s4 = inlined_call_operand.vmem [shape: f32[1,384], index: 4, kind: input, shape index: {}]
  %s5 = inlined_call_operand.vmem [shape: f32[1,384], index: 5, kind: input, shape index: {}]
  %s6 = inlined_call_operand.vmem [shape: f32[1,128], index: 6, kind: input, shape index: {}]
  %s7 = inlined_call_operand.hbm [shape: f32[8,128], index: 7, kind: output, shape index: {}]
  %s8 = sld [smem:[#allocation0]]
  $region54: #{tpu_custom_call.1} parent=0
    _
  %s10 = ssub.s32 1, %s8
  %s11 = scalar_select 0, %s10, %s8
  $region1: #{tpu_custom_call.1} parent=0
    #allocation4 [shape = 'u8[512]{0}', space=smem, size = 0x200, scoped, tag = 'input window, operand 0, single buffered']
    #allocation5 [shape = 's32[1]{0}', space=sflag, size = 0x4, scoped, tag = 'scoped memory for tpu_custom_call.1']
    #allocation6 [shape = 's32[1]{0}', space=sflag, size = 0x4, scoped, tag = 'scoped memory for tpu_custom_call.1']
    #allocation7 [shape = 's32[1]{0}', space=sflag, size = 0x4, scoped, tag = 'scoped memory for tpu_custom_call.1']
    #allocation8 [shape = 'u8[32768]{0}', space=vmem, size = 0x8000, scoped, tag = 'input window, operand 1, single buffered']
    #allocation9 [shape = 'u8[196608]{0}', space=vmem, size = 0x30000, scoped, tag = 'input window, operand 2, single buffered']
    #allocation10 [shape = 's32[1]{0}', space=sflag, size = 0x4, scoped, tag = 'scoped memory for tpu_custom_call.1']
    #allocation11 [shape = 'u8[196608]{0}', space=vmem, size = 0x30000, scoped, tag = 'input window, operand 3, single buffered']
    #allocation12 [shape = 'u8[4096]{0}', space=vmem, size = 0x1000, scoped, tag = 'output window, operand 0, single buffered']
    %12 = vsyncpa [#allocation7], 0
    %13 = vsyncpa [#allocation5], 0
    %14 = vsyncpa [#allocation10], 0
    %15 = vsyncpa [#allocation6], 0
    // Predicated region
    $region2: #{tpu_custom_call.1} parent=1 // pred_check
      _
    $region3: #{tpu_custom_call.1} parent=1 // pred_check_branch
      %17 = sbr.rel (0) target = $region5
    $region4: #{tpu_custom_call.1} parent=1 // pred_region
      %s19 = ssub.s32 16, 16
      %20 = vsyncadd [#allocation7], %s19
      %23 = dma.hbm_to_smem %s0, 16, [#allocation4], [#allocation7]
    $region5: #{tpu_custom_call.1} parent=1 // pred_fallthru
      _
    // Predicated region
    $region6: #{tpu_custom_call.1} parent=1 // pred_check
      _
    $region7: #{tpu_custom_call.1} parent=1 // pred_check_branch
      %25 = sbr.rel (0) target = $region9
    $region8: #{tpu_custom_call.1} parent=1 // pred_region
      %s27 = ssub.s32 1024, 1024
      %28 = vsyncadd [#allocation5], %s27
      %s29 = sshll.u32 [#allocation8], 4
      %s30 = int_to_ptr.vmem [resolvable:$true] %s29
      %35 = dma.hbm_to_vmem [thread:$0]  %s1, 1024, %s30, [#allocation5], 128, 128, 8
    $region9: #{tpu_custom_call.1} parent=1 // pred_fallthru
      _
    // Predicated region
    $region10: #{tpu_custom_call.1} parent=1 // pred_check
      _
    $region11: #{tpu_custom_call.1} parent=1 // pred_check_branch
      %37 = sbr.rel (0) target = $region13
    $region12: #{tpu_custom_call.1} parent=1 // pred_region
      %s39 = ssub.s32 6144, 6144
      %40 = vsyncadd [#allocation10], %s39
      %s41 = sshll.u32 [#allocation9], 4
      %s42 = int_to_ptr.vmem [resolvable:$true] %s41
      %47 = dma.hbm_to_vmem [thread:$0]  %s2, 6144, %s42, [#allocation10], 384, 384, 24
    $region13: #{tpu_custom_call.1} parent=1 // pred_fallthru
      _
    // Predicated region
    $region14: #{tpu_custom_call.1} parent=1 // pred_check
      _
    $region15: #{tpu_custom_call.1} parent=1 // pred_check_branch
      %49 = sbr.rel (0) target = $region17
    $region16: #{tpu_custom_call.1} parent=1 // pred_region
      %s51 = ssub.s32 6144, 6144
      %52 = vsyncadd [#allocation10], %s51
      %s53 = sshll.u32 [#allocation11], 4
      %s54 = int_to_ptr.vmem [resolvable:$true] %s53
      %59 = dma.hbm_to_vmem [thread:$0]  %s3, 6144, %s54, [#allocation10], 384, 384, 24
    $region17: #{tpu_custom_call.1} parent=1 // pred_fallthru
      _
    // Predicated region
    $region18: #{tpu_custom_call.1} parent=1 // pred_check
      _
    $region19: #{tpu_custom_call.1} parent=1 // pred_check_branch
      %61 = sbr.rel (0) target = $region21
    $region20: #{tpu_custom_call.1} parent=1 // pred_region
      _
    $region21: #{tpu_custom_call.1} parent=1 // pred_fallthru
      _
    // Predicated region
    $region22: #{tpu_custom_call.1} parent=1 // pred_check
      _
    $region23: #{tpu_custom_call.1} parent=1 // pred_check_branch
      %63 = sbr.rel (0) target = $region25
    $region24: #{tpu_custom_call.1} parent=1 // pred_region
      _
    $region25: #{tpu_custom_call.1} parent=1 // pred_fallthru
      _
    // Predicated region
    $region26: #{tpu_custom_call.1} parent=1 // pred_check
      _
    $region27: #{tpu_custom_call.1} parent=1 // pred_check_branch
      %65 = sbr.rel (0) target = $region29
    $region28: #{tpu_custom_call.1} parent=1 // pred_region
      _
    $region29: #{tpu_custom_call.1} parent=1 // pred_fallthru
      _
    // Predicated region
    $region30: #{tpu_custom_call.1} parent=1 // pred_check
      _
    $region31: #{tpu_custom_call.1} parent=1 // pred_check_branch
      %67 = sbr.rel (0) target = $region33
    $region32: #{tpu_custom_call.1} parent=1 // pred_region
      %68 = dma.done [#allocation7], 16
    $region33: #{tpu_custom_call.1} parent=1 // pred_fallthru
      _
    // Predicated region
    $region34: #{tpu_custom_call.1} parent=1 // pred_check
      _
    $region35: #{tpu_custom_call.1} parent=1 // pred_check_branch
      %70 = sbr.rel (0) target = $region37
    $region36: #{tpu_custom_call.1} parent=1 // pred_region
      %71 = dma.done [#allocation5], 1024
    $region37: #{tpu_custom_call.1} parent=1 // pred_fallthru
      _
    // Predicated region
    $region38: #{tpu_custom_call.1} parent=1 // pred_check
      _
    $region39: #{tpu_custom_call.1} parent=1 // pred_check_branch
      %73 = sbr.rel (0) target = $region41
    $region40: #{tpu_custom_call.1} parent=1 // pred_region
      %74 = dma.done [#allocation10], 6144
    $region41: #{tpu_custom_call.1} parent=1 // pred_fallthru
      _
    // Predicated region
    $region42: #{tpu_custom_call.1} parent=1 // pred_check
      _
    $region43: #{tpu_custom_call.1} parent=1 // pred_check_branch
      %76 = sbr.rel (0) target = $region45
    $region44: #{tpu_custom_call.1} parent=1 // pred_region
      %77 = dma.done [#allocation10], 6144
    $region45: #{tpu_custom_call.1} parent=1 // pred_fallthru
      _
    %78 = sfence
    %s79 = sld [smem:[#allocation4]]
    %s80 = scalar_lea.vmem [#allocation8], %s79
    %v81 = vld [vmem:[%s80] sm:$0x1]
    %82 = vst [vmem:[#allocation2] sm:$0x1] %v81
    %s83 = sld [smem:[#allocation4 + $0x1]]
    %s84 = scalar_lea.vmem [#allocation8], %s83
    %v85 = vld [vmem:[%s84] sm:$0x1]
    %86 = vst [vmem:[#allocation2 + $0x1] sm:$0x1] %v85
    %s87 = sld [smem:[#allocation4 + $0x2]]
    %s88 = scalar_lea.vmem [#allocation8], %s87
    %v89 = vld [vmem:[%s88] sm:$0x1]
    %90 = vst [vmem:[#allocation2 + $0x2] sm:$0x1] %v89
    %s91 = sld [smem:[#allocation4 + $0x3]]
    %s92 = scalar_lea.vmem [#allocation8], %s91
    %v93 = vld [vmem:[%s92] sm:$0x1]
    %94 = vst [vmem:[#allocation2 + $0x3] sm:$0x1] %v93
    %s95 = sld [smem:[#allocation4 + $0x4]]
    %s96 = scalar_lea.vmem [#allocation8], %s95
    %v97 = vld [vmem:[%s96] sm:$0x1]
    %98 = vst [vmem:[#allocation2 + $0x4] sm:$0x1] %v97
    %s99 = sld [smem:[#allocation4 + $0x5]]
    %s100 = scalar_lea.vmem [#allocation8], %s99
    %v101 = vld [vmem:[%s100] sm:$0x1]
    %102 = vst [vmem:[#allocation2 + $0x5] sm:$0x1] %v101
    %s103 = sld [smem:[#allocation4 + $0x6]]
    %s104 = scalar_lea.vmem [#allocation8], %s103
    %v105 = vld [vmem:[%s104] sm:$0x1]
    %106 = vst [vmem:[#allocation2 + $0x6] sm:$0x1] %v105
    %s107 = sld [smem:[#allocation4 + $0x7]]
    %s108 = scalar_lea.vmem [#allocation8], %s107
    %v109 = vld [vmem:[%s108] sm:$0x1]
    %110 = vst [vmem:[#allocation2 + $0x7] sm:$0x1] %v109
    %v111 = vld [vmem:[#allocation2] sm:$0xff]
    %v112 = vld [vmem:[#allocation9] sm:$0xff]
    %v113 = vld [vmem:[#allocation9 + $0x8] sm:$0xff]
    %v114 = vld [vmem:[#allocation9 + $0x10] sm:$0xff]
    %v115 = vld [vmem:[#allocation9 + $0x18] sm:$0xff]
    %v116 = vld [vmem:[#allocation9 + $0x20] sm:$0xff]
    %v117 = vld [vmem:[#allocation9 + $0x28] sm:$0xff]
    %v118 = vld [vmem:[#allocation9 + $0x30] sm:$0xff]
    %v119 = vld [vmem:[#allocation9 + $0x38] sm:$0xff]
    %v120 = vld [vmem:[#allocation9 + $0x40] sm:$0xff]
    %v121 = vld [vmem:[#allocation9 + $0x48] sm:$0xff]
    %v122 = vld [vmem:[#allocation9 + $0x50] sm:$0xff]
    %v123 = vld [vmem:[#allocation9 + $0x58] sm:$0xff]
    %v124 = vld [vmem:[#allocation9 + $0x60] sm:$0xff]
    %v125 = vld [vmem:[#allocation9 + $0x68] sm:$0xff]
    %v126 = vld [vmem:[#allocation9 + $0x70] sm:$0xff]
    %v127 = vld [vmem:[#allocation9 + $0x78] sm:$0xff]
    %v128 = vld [vmem:[#allocation9 + $0x80] sm:$0xff]
    %v129 = vld [vmem:[#allocation9 + $0x88] sm:$0xff]
    %v130 = vld [vmem:[#allocation9 + $0x90] sm:$0xff]
    %v131 = vld [vmem:[#allocation9 + $0x98] sm:$0xff]
    %v132 = vld [vmem:[#allocation9 + $0xa0] sm:$0xff]
    %v133 = vld [vmem:[#allocation9 + $0xa8] sm:$0xff]
    %v134 = vld [vmem:[#allocation9 + $0xb0] sm:$0xff]
    %v135 = vld [vmem:[#allocation9 + $0xb8] sm:$0xff]
    %v136 = vld [vmem:[#allocation9 + $0xc0] sm:$0xff]
    %v137 = vld [vmem:[#allocation9 + $0xc8] sm:$0xff]
    %v138 = vld [vmem:[#allocation9 + $0xd0] sm:$0xff]
    %v139 = vld [vmem:[#allocation9 + $0xd8] sm:$0xff]
    %v140 = vld [vmem:[#allocation9 + $0xe0] sm:$0xff]
    %v141 = vld [vmem:[#allocation9 + $0xe8] sm:$0xff]
    %v142 = vld [vmem:[#allocation9 + $0xf0] sm:$0xff]
    %v143 = vld [vmem:[#allocation9 + $0xf8] sm:$0xff]
    %v144 = vld [vmem:[#allocation9 + $0x100] sm:$0xff]
    %v145 = vld [vmem:[#allocation9 + $0x108] sm:$0xff]
    %v146 = vld [vmem:[#allocation9 + $0x110] sm:$0xff]
    %v147 = vld [vmem:[#allocation9 + $0x118] sm:$0xff]
    %v148 = vld [vmem:[#allocation9 + $0x120] sm:$0xff]
    %v149 = vld [vmem:[#allocation9 + $0x128] sm:$0xff]
    %v150 = vld [vmem:[#allocation9 + $0x130] sm:$0xff]
    %v151 = vld [vmem:[#allocation9 + $0x138] sm:$0xff]
    %v152 = vld [vmem:[#allocation9 + $0x140] sm:$0xff]
    %v153 = vld [vmem:[#allocation9 + $0x148] sm:$0xff]
    %v154 = vld [vmem:[#allocation9 + $0x150] sm:$0xff]
    %v155 = vld [vmem:[#allocation9 + $0x158] sm:$0xff]
    %v156 = vld [vmem:[#allocation9 + $0x160] sm:$0xff]
    %v157 = vld [vmem:[#allocation9 + $0x168] sm:$0xff]
    %v158 = vld [vmem:[#allocation9 + $0x170] sm:$0xff]
    %v159 = vld [vmem:[#allocation9 + $0x178] sm:$0xff]
    %v160 = vld [vmem:[%s4] sm:$0x7]
    %v162 = vlaneseq
    %v163 = vshrl.u32 %v162, 7
    %v164 = vsub.s32 0, %v163
    %v165 = vrot.slane %v160, %v164
    %v166 = vlaneseq
    %v167 = vshrl.u32 %v166, 7
    %v168 = vsub.s32 1, %v167
    %v169 = vrot.slane %v160, %v168
    %v170 = vlaneseq
    %v171 = vshrl.u32 %v170, 7
    %v172 = vsub.s32 2, %v171
    %v173 = vrot.slane %v160, %v172
    %177 = vmatprep.subr.mxu0 %v113
    %178 = vmatpush1.msra.mxu0 %v112
    %179 = vmatprep.subr.mxu0 %v116
    %180 = vmatpush1.msra.mxu0 %v115
    %181 = vmatprep.subr.mxu0 %v119
    %182 = vmatpush1.msra.mxu0 %v118
    %183 = vmatprep.subr.mxu0 %v122
    %184 = vmatpush1.msra.mxu0 %v121
    %185 = vmatprep.subr.mxu0 %v125
    %186 = vmatpush1.msra.mxu0 %v124
    %187 = vmatprep.subr.mxu0 %v128
    %188 = vmatpush1.msra.mxu0 %v127
    %189 = vmatprep.subr.mxu0 %v131
    %190 = vmatpush1.msra.mxu0 %v130
    %191 = vmatprep.subr.mxu0 %v134
    %192 = vmatpush1.msra.mxu0 %v133
    %193 = vmatprep.subr.mxu0 %v137
    %194 = vmatpush1.msra.mxu0 %v136
    %195 = vmatprep.subr.mxu0 %v140
    %196 = vmatpush1.msra.mxu0 %v139
    %197 = vmatprep.subr.mxu0 %v143
    %198 = vmatpush1.msra.mxu0 %v142
    %199 = vmatprep.subr.mxu0 %v146
    %200 = vmatpush1.msra.mxu0 %v145
    %201 = vmatprep.subr.mxu0 %v149
    %202 = vmatpush1.msra.mxu0 %v148
    %203 = vmatprep.subr.mxu0 %v152
    %204 = vmatpush1.msra.mxu0 %v151
    %205 = vmatprep.subr.mxu0 %v155
    %206 = vmatpush1.msra.mxu0 %v154
    %207 = vmatprep.subr.mxu0 %v158
    %208 = vmatpush1.msra.mxu0 %v157
    %209 = vmatprep.subr.mxu0 0.0
    %210 = vmatpush1.msra.mxu0 0.0
    %211 = vmatprep.subr.mxu0 0.0
    %212 = vmatpush1.msra.mxu0 0.0
    %213 = vmatprep.subr.mxu0 0.0
    %214 = vmatpush1.msra.mxu0 0.0
    %215 = vmatprep.subr.mxu0 0.0
    %216 = vmatpush1.msra.mxu0 0.0
    %217 = vmatprep.subr.mxu0 0.0
    %218 = vmatpush1.msra.mxu0 0.0
    %219 = vmatprep.subr.mxu0 0.0
    %220 = vmatpush1.msra.mxu0 0.0
    %221 = vmatprep.subr.mxu0 0.0
    %222 = vmatpush1.msra.mxu0 0.0
    %223 = vmatprep.subr.mxu0 0.0
    %224 = vmatpush1.msra.mxu0 0.0
    %225 = vmatprep.subr.mxu0 0.0
    %226 = vmatpush1.msra.mxu0 0.0
    %227 = vmatprep.subr.mxu0 0.0
    %228 = vmatpush1.msra.mxu0 0.0
    %229 = vmatprep.subr.mxu0 0.0
    %230 = vmatpush1.msra.mxu0 0.0
    %231 = vmatprep.subr.mxu0 0.0
    %232 = vmatpush1.msra.mxu0 0.0
    %233 = vmatprep.subr.mxu0 0.0
    %234 = vmatpush1.msra.mxu0 0.0
    %235 = vmatprep.subr.mxu0 0.0
    %236 = vmatpush1.msra.mxu0 0.0
    %237 = vmatprep.subr.mxu0 0.0
    %238 = vmatpush1.msra.mxu0 0.0
    %239 = vmatprep.subr.mxu0 0.0
    %240 = vmatpush1.msra.mxu0 0.0
    %241 = vmatprep.mubr.f32.mxu0 0.0
    %242 = vmatmul.mubr.f32.gmra.mrb[0].mxu0 %v111
    %v243 = vpop.f32.mrb[0].mxu0
    %v244 = vadd.f32 %v165, %v243
    %v245 = vpop.f32.mrb[0].mxu0
    %v246 = vadd.f32 %v169, %v245
    %247 = vdwg.mxu0
    %248 = vmatprep.subr.mxu0 0.0
    %249 = vmatpush1.msra.mxu0 %v114
    %250 = vmatprep.subr.mxu0 0.0
    %251 = vmatpush1.msra.mxu0 %v117
    %252 = vmatprep.subr.mxu0 0.0
    %253 = vmatpush1.msra.mxu0 %v120
    %254 = vmatprep.subr.mxu0 0.0
    %255 = vmatpush1.msra.mxu0 %v123
    %256 = vmatprep.subr.mxu0 0.0
    %257 = vmatpush1.msra.mxu0 %v126
    %258 = vmatprep.subr.mxu0 0.0
    %259 = vmatpush1.msra.mxu0 %v129
    %260 = vmatprep.subr.mxu0 0.0
    %261 = vmatpush1.msra.mxu0 %v132
    %262 = vmatprep.subr.mxu0 0.0
    %263 = vmatpush1.msra.mxu0 %v135
    %264 = vmatprep.subr.mxu0 0.0
    %265 = vmatpush1.msra.mxu0 %v138
    %266 = vmatprep.subr.mxu0 0.0
    %267 = vmatpush1.msra.mxu0 %v141
    %268 = vmatprep.subr.mxu0 0.0
    %269 = vmatpush1.msra.mxu0 %v144
    %270 = vmatprep.subr.mxu0 0.0
    %271 = vmatpush1.msra.mxu0 %v147
    %272 = vmatprep.subr.mxu0 0.0
    %273 = vmatpush1.msra.mxu0 %v150
    %274 = vmatprep.subr.mxu0 0.0
    %275 = vmatpush1.msra.mxu0 %v153
    %276 = vmatprep.subr.mxu0 0.0
    %277 = vmatpush1.msra.mxu0 %v156
    %278 = vmatprep.subr.mxu0 0.0
    %279 = vmatpush1.msra.mxu0 %v159
    %280 = vmatprep.subr.mxu0 0.0
    %281 = vmatpush1.msra.mxu0 0.0
    %282 = vmatprep.subr.mxu0 0.0
    %283 = vmatpush1.msra.mxu0 0.0
    %284 = vmatprep.subr.mxu0 0.0
    %285 = vmatpush1.msra.mxu0 0.0
    %286 = vmatprep.subr.mxu0 0.0
    %287 = vmatpush1.msra.mxu0 0.0
    %288 = vmatprep.subr.mxu0 0.0
    %289 = vmatpush1.msra.mxu0 0.0
    %290 = vmatprep.subr.mxu0 0.0
    %291 = vmatpush1.msra.mxu0 0.0
    %292 = vmatprep.subr.mxu0 0.0
    %293 = vmatpush1.msra.mxu0 0.0
    %294 = vmatprep.subr.mxu0 0.0
    %295 = vmatpush1.msra.mxu0 0.0
    %296 = vmatprep.subr.mxu0 0.0
    %297 = vmatpush1.msra.mxu0 0.0
    %298 = vmatprep.subr.mxu0 0.0
    %299 = vmatpush1.msra.mxu0 0.0
    %300 = vmatprep.subr.mxu0 0.0
    %301 = vmatpush1.msra.mxu0 0.0
    %302 = vmatprep.subr.mxu0 0.0
    %303 = vmatpush1.msra.mxu0 0.0
    %304 = vmatprep.subr.mxu0 0.0
    %305 = vmatpush1.msra.mxu0 0.0
    %306 = vmatprep.subr.mxu0 0.0
    %307 = vmatpush1.msra.mxu0 0.0
    %308 = vmatprep.subr.mxu0 0.0
    %309 = vmatpush1.msra.mxu0 0.0
    %310 = vmatprep.subr.mxu0 0.0
    %311 = vmatpush1.msra.mxu0 0.0
    %312 = vmatprep.mubr.f32.mxu0 0.0
    %313 = vmatmul.mubr.f32.gmra.mrb[0].mxu0 %v111
    %v314 = vpop.f32.mrb[0].mxu0
    %v315 = vadd.f32 %v173, %v314
    %v316 = vpop.f32.mrb[0].mxu0
    %317 = vdwg.mxu0
    %318 = vst [vmem:[#allocation3] sm:$0xff] %v244
    %319 = vst [vmem:[#allocation3 + $0x8] sm:$0xff] %v246
    %320 = vst [vmem:[#allocation3 + $0x10] sm:$0xff] %v315
    %v321 = vld [vmem:[%s6] sm:$0x1]
    %v322 = vld [vmem:[#allocation3] ss:$8 sm:$0x7]
    %v323 = vld [vmem:[#allocation11] sm:$0xff]
    %v324 = vld [vmem:[#allocation11 + $0x8] sm:$0xff]
    %v325 = vld [vmem:[#allocation11 + $0x10] sm:$0xff]
    %v326 = vld [vmem:[#allocation11 + $0x18] sm:$0xff]
    %v327 = vld [vmem:[#allocation11 + $0x20] sm:$0xff]
    %v328 = vld [vmem:[#allocation11 + $0x28] sm:$0xff]
    %v329 = vld [vmem:[#allocation11 + $0x30] sm:$0xff]
    %v330 = vld [vmem:[#allocation11 + $0x38] sm:$0xff]
    %v331 = vld [vmem:[#allocation11 + $0x40] sm:$0xff]
    %v332 = vld [vmem:[#allocation11 + $0x48] sm:$0xff]
    %v333 = vld [vmem:[#allocation11 + $0x50] sm:$0xff]
    %v334 = vld [vmem:[#allocation11 + $0x58] sm:$0xff]
    %v335 = vld [vmem:[#allocation11 + $0x60] sm:$0xff]
    %v336 = vld [vmem:[#allocation11 + $0x68] sm:$0xff]
    %v337 = vld [vmem:[#allocation11 + $0x70] sm:$0xff]
    %v338 = vld [vmem:[#allocation11 + $0x78] sm:$0xff]
    %v339 = vld [vmem:[#allocation11 + $0x80] sm:$0xff]
    %v340 = vld [vmem:[#allocation11 + $0x88] sm:$0xff]
    %v341 = vld [vmem:[#allocation11 + $0x90] sm:$0xff]
    %v342 = vld [vmem:[#allocation11 + $0x98] sm:$0xff]
    %v343 = vld [vmem:[#allocation11 + $0xa0] sm:$0xff]
    %v344 = vld [vmem:[#allocation11 + $0xa8] sm:$0xff]
    %v345 = vld [vmem:[#allocation11 + $0xb0] sm:$0xff]
    %v346 = vld [vmem:[#allocation11 + $0xb8] sm:$0xff]
    %v347 = vld [vmem:[#allocation11 + $0xc0] sm:$0xff]
    %v348 = vld [vmem:[#allocation11 + $0xc8] sm:$0xff]
    %v349 = vld [vmem:[#allocation11 + $0xd0] sm:$0xff]
    %v350 = vld [vmem:[#allocation11 + $0xd8] sm:$0xff]
    %v351 = vld [vmem:[#allocation11 + $0xe0] sm:$0xff]
    %v352 = vld [vmem:[#allocation11 + $0xe8] sm:$0xff]
    %v353 = vld [vmem:[#allocation11 + $0xf0] sm:$0xff]
    %v354 = vld [vmem:[#allocation11 + $0xf8] sm:$0xff]
    %v355 = vld [vmem:[#allocation11 + $0x100] sm:$0xff]
    %v356 = vld [vmem:[#allocation11 + $0x108] sm:$0xff]
    %v357 = vld [vmem:[#allocation11 + $0x110] sm:$0xff]
    %v358 = vld [vmem:[#allocation11 + $0x118] sm:$0xff]
    %v359 = vld [vmem:[#allocation11 + $0x120] sm:$0xff]
    %v360 = vld [vmem:[#allocation11 + $0x128] sm:$0xff]
    %v361 = vld [vmem:[#allocation11 + $0x130] sm:$0xff]
    %v362 = vld [vmem:[#allocation11 + $0x138] sm:$0xff]
    %v363 = vld [vmem:[#allocation11 + $0x140] sm:$0xff]
    %v364 = vld [vmem:[#allocation11 + $0x148] sm:$0xff]
    %v365 = vld [vmem:[#allocation11 + $0x150] sm:$0xff]
    %v366 = vld [vmem:[#allocation11 + $0x158] sm:$0xff]
    %v367 = vld [vmem:[#allocation11 + $0x160] sm:$0xff]
    %v368 = vld [vmem:[#allocation11 + $0x168] sm:$0xff]
    %v369 = vld [vmem:[#allocation11 + $0x170] sm:$0xff]
    %v370 = vld [vmem:[#allocation11 + $0x178] sm:$0xff]
    %v371 = vld [vmem:[%s5] sm:$0x7]
    %v373 = vlaneseq
    %v374 = vshrl.u32 %v373, 7
    %v375 = vsub.s32 0, %v374
    %v376 = vrot.slane %v371, %v375
    %v377 = vlaneseq
    %v378 = vshrl.u32 %v377, 7
    %v379 = vsub.s32 1, %v378
    %v380 = vrot.slane %v371, %v379
    %v381 = vlaneseq
    %v382 = vshrl.u32 %v381, 7
    %v383 = vsub.s32 2, %v382
    %v384 = vrot.slane %v371, %v383
    %388 = vmatprep.subr.mxu0 %v324
    %389 = vmatpush1.msra.mxu0 %v323
    %390 = vmatprep.subr.mxu0 %v327
    %391 = vmatpush1.msra.mxu0 %v326
    %392 = vmatprep.subr.mxu0 %v330
    %393 = vmatpush1.msra.mxu0 %v329
    %394 = vmatprep.subr.mxu0 %v333
    %395 = vmatpush1.msra.mxu0 %v332
    %396 = vmatprep.subr.mxu0 %v336
    %397 = vmatpush1.msra.mxu0 %v335
    %398 = vmatprep.subr.mxu0 %v339
    %399 = vmatpush1.msra.mxu0 %v338
    %400 = vmatprep.subr.mxu0 %v342
    %401 = vmatpush1.msra.mxu0 %v341
    %402 = vmatprep.subr.mxu0 %v345
    %403 = vmatpush1.msra.mxu0 %v344
    %404 = vmatprep.subr.mxu0 %v348
    %405 = vmatpush1.msra.mxu0 %v347
    %406 = vmatprep.subr.mxu0 %v351
    %407 = vmatpush1.msra.mxu0 %v350
    %408 = vmatprep.subr.mxu0 %v354
    %409 = vmatpush1.msra.mxu0 %v353
    %410 = vmatprep.subr.mxu0 %v357
    %411 = vmatpush1.msra.mxu0 %v356
    %412 = vmatprep.subr.mxu0 %v360
    %413 = vmatpush1.msra.mxu0 %v359
    %414 = vmatprep.subr.mxu0 %v363
    %415 = vmatpush1.msra.mxu0 %v362
    %416 = vmatprep.subr.mxu0 %v366
    %417 = vmatpush1.msra.mxu0 %v365
    %418 = vmatprep.subr.mxu0 %v369
    %419 = vmatpush1.msra.mxu0 %v368
    %420 = vmatprep.subr.mxu0 0.0
    %421 = vmatpush1.msra.mxu0 0.0
    %422 = vmatprep.subr.mxu0 0.0
    %423 = vmatpush1.msra.mxu0 0.0
    %424 = vmatprep.subr.mxu0 0.0
    %425 = vmatpush1.msra.mxu0 0.0
    %426 = vmatprep.subr.mxu0 0.0
    %427 = vmatpush1.msra.mxu0 0.0
    %428 = vmatprep.subr.mxu0 0.0
    %429 = vmatpush1.msra.mxu0 0.0
    %430 = vmatprep.subr.mxu0 0.0
    %431 = vmatpush1.msra.mxu0 0.0
    %432 = vmatprep.subr.mxu0 0.0
    %433 = vmatpush1.msra.mxu0 0.0
    %434 = vmatprep.subr.mxu0 0.0
    %435 = vmatpush1.msra.mxu0 0.0
    %436 = vmatprep.subr.mxu0 0.0
    %437 = vmatpush1.msra.mxu0 0.0
    %438 = vmatprep.subr.mxu0 0.0
    %439 = vmatpush1.msra.mxu0 0.0
    %440 = vmatprep.subr.mxu0 0.0
    %441 = vmatpush1.msra.mxu0 0.0
    %442 = vmatprep.subr.mxu0 0.0
    %443 = vmatpush1.msra.mxu0 0.0
    %444 = vmatprep.subr.mxu0 0.0
    %445 = vmatpush1.msra.mxu0 0.0
    %446 = vmatprep.subr.mxu0 0.0
    %447 = vmatpush1.msra.mxu0 0.0
    %448 = vmatprep.subr.mxu0 0.0
    %449 = vmatpush1.msra.mxu0 0.0
    %450 = vmatprep.subr.mxu0 0.0
    %451 = vmatpush1.msra.mxu0 0.0
    %452 = vmatprep.mubr.f32.mxu0 0.0
    %453 = vmatmul.mubr.f32.gmra.mrb[0].mxu0 %v321
    %v454 = vpop.f32.mrb[0].mxu0
    %v455 = vadd.f32 %v376, %v454
    %v456 = vpop.f32.mrb[0].mxu0
    %v457 = vadd.f32 %v380, %v456
    %458 = vdwg.mxu0
    %459 = vmatprep.subr.mxu0 0.0
    %460 = vmatpush1.msra.mxu0 %v325
    %461 = vmatprep.subr.mxu0 0.0
    %462 = vmatpush1.msra.mxu0 %v328
    %463 = vmatprep.subr.mxu0 0.0
    %464 = vmatpush1.msra.mxu0 %v331
    %465 = vmatprep.subr.mxu0 0.0
    %466 = vmatpush1.msra.mxu0 %v334
    %467 = vmatprep.subr.mxu0 0.0
    %468 = vmatpush1.msra.mxu0 %v337
    %469 = vmatprep.subr.mxu0 0.0
    %470 = vmatpush1.msra.mxu0 %v340
    %471 = vmatprep.subr.mxu0 0.0
    %472 = vmatpush1.msra.mxu0 %v343
    %473 = vmatprep.subr.mxu0 0.0
    %474 = vmatpush1.msra.mxu0 %v346
    %475 = vmatprep.subr.mxu0 0.0
    %476 = vmatpush1.msra.mxu0 %v349
    %477 = vmatprep.subr.mxu0 0.0
    %478 = vmatpush1.msra.mxu0 %v352
    %479 = vmatprep.subr.mxu0 0.0
    %480 = vmatpush1.msra.mxu0 %v355
    %481 = vmatprep.subr.mxu0 0.0
    %482 = vmatpush1.msra.mxu0 %v358
    %483 = vmatprep.subr.mxu0 0.0
    %484 = vmatpush1.msra.mxu0 %v361
    %485 = vmatprep.subr.mxu0 0.0
    %486 = vmatpush1.msra.mxu0 %v364
    %487 = vmatprep.subr.mxu0 0.0
    %488 = vmatpush1.msra.mxu0 %v367
    %489 = vmatprep.subr.mxu0 0.0
    %490 = vmatpush1.msra.mxu0 %v370
    %491 = vmatprep.subr.mxu0 0.0
    %492 = vmatpush1.msra.mxu0 0.0
    %493 = vmatprep.subr.mxu0 0.0
    %494 = vmatpush1.msra.mxu0 0.0
    %495 = vmatprep.subr.mxu0 0.0
    %496 = vmatpush1.msra.mxu0 0.0
    %497 = vmatprep.subr.mxu0 0.0
    %498 = vmatpush1.msra.mxu0 0.0
    %499 = vmatprep.subr.mxu0 0.0
    %500 = vmatpush1.msra.mxu0 0.0
    %501 = vmatprep.subr.mxu0 0.0
    %502 = vmatpush1.msra.mxu0 0.0
    %503 = vmatprep.subr.mxu0 0.0
    %504 = vmatpush1.msra.mxu0 0.0
    %505 = vmatprep.subr.mxu0 0.0
    %506 = vmatpush1.msra.mxu0 0.0
    %507 = vmatprep.subr.mxu0 0.0
    %508 = vmatpush1.msra.mxu0 0.0
    %509 = vmatprep.subr.mxu0 0.0
    %510 = vmatpush1.msra.mxu0 0.0
    %511 = vmatprep.subr.mxu0 0.0
    %512 = vmatpush1.msra.mxu0 0.0
    %513 = vmatprep.subr.mxu0 0.0
    %514 = vmatpush1.msra.mxu0 0.0
    %515 = vmatprep.subr.mxu0 0.0
    %516 = vmatpush1.msra.mxu0 0.0
    %517 = vmatprep.subr.mxu0 0.0
    %518 = vmatpush1.msra.mxu0 0.0
    %519 = vmatprep.subr.mxu0 0.0
    %520 = vmatpush1.msra.mxu0 0.0
    %521 = vmatprep.subr.mxu0 0.0
    %522 = vmatpush1.msra.mxu0 0.0
    %523 = vmatprep.mubr.f32.mxu0 0.0
    %524 = vmatmul.mubr.f32.gmra.mrb[0].mxu0 %v321
    %v525 = vpop.f32.mrb[0].mxu0
    %v526 = vadd.f32 %v384, %v525
    %v527 = vpop.f32.mrb[0].mxu0
    %528 = vdwg.mxu0
    %v529 = vadd.f32 %v322, %v455
    %v530 = vxor.u32 %v529, 2147483648
    %v531 = vmul.f32 %v530, 1.442695
    %v532 = vpow.pop %v531
    %v533 = vadd.f32 %v532, 1.0
    %v534 = vrcp.pop %v533
    %v535 = vmul.f32 1.0, %v534
    %v537 = vrot.slane %v322, 1
    %v539 = vadd.f32 %v537, %v457
    %v540 = vxor.u32 %v539, 2147483648
    %v541 = vmul.f32 %v540, 1.442695
    %v542 = vpow.pop %v541
    %v543 = vadd.f32 %v542, 1.0
    %v544 = vrcp.pop %v543
    %v545 = vmul.f32 1.0, %v544
    %v546 = vmul.f32 %v535, %v526
    %v547 = vrot.slane %v322, 2
    %v549 = vadd.f32 %v547, %v546
    %v550 = vtanh.pop %v549
    %v551 = vsub.f32 %v321, %v550
    %v552 = vmul.f32 %v545, %v551
    %v553 = vadd.f32 %v550, %v552
    %554 = vst [vmem:[#allocation12] sm:$0x1] %v553
    %s555 = scalar_lea.vmem [#allocation3], 1
    %v556 = vld [vmem:[%s555] ss:$8 sm:$0x7]
    %v557 = vld [vmem:[#allocation11] sm:$0xff]
    %v558 = vld [vmem:[#allocation11 + $0x8] sm:$0xff]
    %v559 = vld [vmem:[#allocation11 + $0x10] sm:$0xff]
    %v560 = vld [vmem:[#allocation11 + $0x18] sm:$0xff]
    %v561 = vld [vmem:[#allocation11 + $0x20] sm:$0xff]
    %v562 = vld [vmem:[#allocation11 + $0x28] sm:$0xff]
    %v563 = vld [vmem:[#allocation11 + $0x30] sm:$0xff]
    %v564 = vld [vmem:[#allocation11 + $0x38] sm:$0xff]
    %v565 = vld [vmem:[#allocation11 + $0x40] sm:$0xff]
    %v566 = vld [vmem:[#allocation11 + $0x48] sm:$0xff]
    %v567 = vld [vmem:[#allocation11 + $0x50] sm:$0xff]
    %v568 = vld [vmem:[#allocation11 + $0x58] sm:$0xff]
    %v569 = vld [vmem:[#allocation11 + $0x60] sm:$0xff]
    %v570 = vld [vmem:[#allocation11 + $0x68] sm:$0xff]
    %v571 = vld [vmem:[#allocation11 + $0x70] sm:$0xff]
    %v572 = vld [vmem:[#allocation11 + $0x78] sm:$0xff]
    %v573 = vld [vmem:[#allocation11 + $0x80] sm:$0xff]
    %v574 = vld [vmem:[#allocation11 + $0x88] sm:$0xff]
    %v575 = vld [vmem:[#allocation11 + $0x90] sm:$0xff]
    %v576 = vld [vmem:[#allocation11 + $0x98] sm:$0xff]
    %v577 = vld [vmem:[#allocation11 + $0xa0] sm:$0xff]
    %v578 = vld [vmem:[#allocation11 + $0xa8] sm:$0xff]
    %v579 = vld [vmem:[#allocation11 + $0xb0] sm:$0xff]
    %v580 = vld [vmem:[#allocation11 + $0xb8] sm:$0xff]
    %v581 = vld [vmem:[#allocation11 + $0xc0] sm:$0xff]
    %v582 = vld [vmem:[#allocation11 + $0xc8] sm:$0xff]
    %v583 = vld [vmem:[#allocation11 + $0xd0] sm:$0xff]
    %v584 = vld [vmem:[#allocation11 + $0xd8] sm:$0xff]
    %v585 = vld [vmem:[#allocation11 + $0xe0] sm:$0xff]
    %v586 = vld [vmem:[#allocation11 + $0xe8] sm:$0xff]
    %v587 = vld [vmem:[#allocation11 + $0xf0] sm:$0xff]
    %v588 = vld [vmem:[#allocation11 + $0xf8] sm:$0xff]
    %v589 = vld [vmem:[#allocation11 + $0x100] sm:$0xff]
    %v590 = vld [vmem:[#allocation11 + $0x108] sm:$0xff]
    %v591 = vld [vmem:[#allocation11 + $0x110] sm:$0xff]
    %v592 = vld [vmem:[#allocation11 + $0x118] sm:$0xff]
    %v593 = vld [vmem:[#allocation11 + $0x120] sm:$0xff]
    %v594 = vld [vmem:[#allocation11 + $0x128] sm:$0xff]
    %v595 = vld [vmem:[#allocation11 + $0x130] sm:$0xff]
    %v596 = vld [vmem:[#allocation11 + $0x138] sm:$0xff]
    %v597 = vld [vmem:[#allocation11 + $0x140] sm:$0xff]
    %v598 = vld [vmem:[#allocation11 + $0x148] sm:$0xff]
    %v599 = vld [vmem:[#allocation11 + $0x150] sm:$0xff]
    %v600 = vld [vmem:[#allocation11 + $0x158] sm:$0xff]
    %v601 = vld [vmem:[#allocation11 + $0x160] sm:$0xff]
    %v602 = vld [vmem:[#allocation11 + $0x168] sm:$0xff]
    %v603 = vld [vmem:[#allocation11 + $0x170] sm:$0xff]
    %v604 = vld [vmem:[#allocation11 + $0x178] sm:$0xff]
    %v605 = vld [vmem:[%s5] sm:$0x7]
    %v607 = vlaneseq
    %v608 = vshrl.u32 %v607, 7
    %v609 = vsub.s32 0, %v608
    %v610 = vrot.slane %v605, %v609
    %v611 = vlaneseq
    %v612 = vshrl.u32 %v611, 7
    %v613 = vsub.s32 1, %v612
    %v614 = vrot.slane %v605, %v613
    %v615 = vlaneseq
    %v616 = vshrl.u32 %v615, 7
    %v617 = vsub.s32 2, %v616
    %v618 = vrot.slane %v605, %v617
    %622 = vmatprep.subr.mxu0 %v558
    %623 = vmatpush1.msra.mxu0 %v557
    %624 = vmatprep.subr.mxu0 %v561
    %625 = vmatpush1.msra.mxu0 %v560
    %626 = vmatprep.subr.mxu0 %v564
    %627 = vmatpush1.msra.mxu0 %v563
    %628 = vmatprep.subr.mxu0 %v567
    %629 = vmatpush1.msra.mxu0 %v566
    %630 = vmatprep.subr.mxu0 %v570
    %631 = vmatpush1.msra.mxu0 %v569
    %632 = vmatprep.subr.mxu0 %v573
    %633 = vmatpush1.msra.mxu0 %v572
    %634 = vmatprep.subr.mxu0 %v576
    %635 = vmatpush1.msra.mxu0 %v575
    %636 = vmatprep.subr.mxu0 %v579
    %637 = vmatpush1.msra.mxu0 %v578
    %638 = vmatprep.subr.mxu0 %v582
    %639 = vmatpush1.msra.mxu0 %v581
    %640 = vmatprep.subr.mxu0 %v585
    %641 = vmatpush1.msra.mxu0 %v584
    %642 = vmatprep.subr.mxu0 %v588
    %643 = vmatpush1.msra.mxu0 %v587
    %644 = vmatprep.subr.mxu0 %v591
    %645 = vmatpush1.msra.mxu0 %v590
    %646 = vmatprep.subr.mxu0 %v594
    %647 = vmatpush1.msra.mxu0 %v593
    %648 = vmatprep.subr.mxu0 %v597
    %649 = vmatpush1.msra.mxu0 %v596
    %650 = vmatprep.subr.mxu0 %v600
    %651 = vmatpush1.msra.mxu0 %v599
    %652 = vmatprep.subr.mxu0 %v603
    %653 = vmatpush1.msra.mxu0 %v602
    %654 = vmatprep.subr.mxu0 0.0
    %655 = vmatpush1.msra.mxu0 0.0
    %656 = vmatprep.subr.mxu0 0.0
    %657 = vmatpush1.msra.mxu0 0.0
    %658 = vmatprep.subr.mxu0 0.0
    %659 = vmatpush1.msra.mxu0 0.0
    %660 = vmatprep.subr.mxu0 0.0
    %661 = vmatpush1.msra.mxu0 0.0
    %662 = vmatprep.subr.mxu0 0.0
    %663 = vmatpush1.msra.mxu0 0.0
    %664 = vmatprep.subr.mxu0 0.0
    %665 = vmatpush1.msra.mxu0 0.0
    %666 = vmatprep.subr.mxu0 0.0
    %667 = vmatpush1.msra.mxu0 0.0
    %668 = vmatprep.subr.mxu0 0.0
    %669 = vmatpush1.msra.mxu0 0.0
    %670 = vmatprep.subr.mxu0 0.0
    %671 = vmatpush1.msra.mxu0 0.0
    %672 = vmatprep.subr.mxu0 0.0
    %673 = vmatpush1.msra.mxu0 0.0
    %674 = vmatprep.subr.mxu0 0.0
    %675 = vmatpush1.msra.mxu0 0.0
    %676 = vmatprep.subr.mxu0 0.0
    %677 = vmatpush1.msra.mxu0 0.0
    %678 = vmatprep.subr.mxu0 0.0
    %679 = vmatpush1.msra.mxu0 0.0
    %680 = vmatprep.subr.mxu0 0.0
    %681 = vmatpush1.msra.mxu0 0.0
    %682 = vmatprep.subr.mxu0 0.0
    %683 = vmatpush1.msra.mxu0 0.0
    %684 = vmatprep.subr.mxu0 0.0
    %685 = vmatpush1.msra.mxu0 0.0
    %686 = vmatprep.mubr.f32.mxu0 0.0
    %687 = vmatmul.mubr.f32.gmra.mrb[0].mxu0 %v553
    %v688 = vpop.f32.mrb[0].mxu0
    %v689 = vadd.f32 %v610, %v688
    %v690 = vpop.f32.mrb[0].mxu0
    %v691 = vadd.f32 %v614, %v690
    %692 = vdwg.mxu0
    %693 = vmatprep.subr.mxu0 0.0
    %694 = vmatpush1.msra.mxu0 %v559
    %695 = vmatprep.subr.mxu0 0.0
    %696 = vmatpush1.msra.mxu0 %v562
    %697 = vmatprep.subr.mxu0 0.0
    %698 = vmatpush1.msra.mxu0 %v565
    %699 = vmatprep.subr.mxu0 0.0
    %700 = vmatpush1.msra.mxu0 %v568
    %701 = vmatprep.subr.mxu0 0.0
    %702 = vmatpush1.msra.mxu0 %v571
    %703 = vmatprep.subr.mxu0 0.0
    %704 = vmatpush1.msra.mxu0 %v574
    %705 = vmatprep.subr.mxu0 0.0
    %706 = vmatpush1.msra.mxu0 %v577
    %707 = vmatprep.subr.mxu0 0.0
    %708 = vmatpush1.msra.mxu0 %v580
    %709 = vmatprep.subr.mxu0 0.0
    %710 = vmatpush1.msra.mxu0 %v583
    %711 = vmatprep.subr.mxu0 0.0
    %712 = vmatpush1.msra.mxu0 %v586
    %713 = vmatprep.subr.mxu0 0.0
    %714 = vmatpush1.msra.mxu0 %v589
    %715 = vmatprep.subr.mxu0 0.0
    %716 = vmatpush1.msra.mxu0 %v592
    %717 = vmatprep.subr.mxu0 0.0
    %718 = vmatpush1.msra.mxu0 %v595
    %719 = vmatprep.subr.mxu0 0.0
    %720 = vmatpush1.msra.mxu0 %v598
    %721 = vmatprep.subr.mxu0 0.0
    %722 = vmatpush1.msra.mxu0 %v601
    %723 = vmatprep.subr.mxu0 0.0
    %724 = vmatpush1.msra.mxu0 %v604
    %725 = vmatprep.subr.mxu0 0.0
    %726 = vmatpush1.msra.mxu0 0.0
    %727 = vmatprep.subr.mxu0 0.0
    %728 = vmatpush1.msra.mxu0 0.0
    %729 = vmatprep.subr.mxu0 0.0
    %730 = vmatpush1.msra.mxu0 0.0
    %731 = vmatprep.subr.mxu0 0.0
    %732 = vmatpush1.msra.mxu0 0.0
    %733 = vmatprep.subr.mxu0 0.0
    %734 = vmatpush1.msra.mxu0 0.0
    %735 = vmatprep.subr.mxu0 0.0
    %736 = vmatpush1.msra.mxu0 0.0
    %737 = vmatprep.subr.mxu0 0.0
    %738 = vmatpush1.msra.mxu0 0.0
    %739 = vmatprep.subr.mxu0 0.0
    %740 = vmatpush1.msra.mxu0 0.0
    %741 = vmatprep.subr.mxu0 0.0
    %742 = vmatpush1.msra.mxu0 0.0
    %743 = vmatprep.subr.mxu0 0.0
    %744 = vmatpush1.msra.mxu0 0.0
    %745 = vmatprep.subr.mxu0 0.0
    %746 = vmatpush1.msra.mxu0 0.0
    %747 = vmatprep.subr.mxu0 0.0
    %748 = vmatpush1.msra.mxu0 0.0
    %749 = vmatprep.subr.mxu0 0.0
    %750 = vmatpush1.msra.mxu0 0.0
    %751 = vmatprep.subr.mxu0 0.0
    %752 = vmatpush1.msra.mxu0 0.0
    %753 = vmatprep.subr.mxu0 0.0
    %754 = vmatpush1.msra.mxu0 0.0
    %755 = vmatprep.subr.mxu0 0.0
    %756 = vmatpush1.msra.mxu0 0.0
    %757 = vmatprep.mubr.f32.mxu0 0.0
    %758 = vmatmul.mubr.f32.gmra.mrb[0].mxu0 %v553
    %v759 = vpop.f32.mrb[0].mxu0
    %v760 = vadd.f32 %v618, %v759
    %v761 = vpop.f32.mrb[0].mxu0
    %762 = vdwg.mxu0
    %v763 = vadd.f32 %v556, %v689
    %v764 = vxor.u32 %v763, 2147483648
    %v765 = vmul.f32 %v764, 1.442695
    %v766 = vpow.pop %v765
    %v767 = vadd.f32 %v766, 1.0
    %v768 = vrcp.pop %v767
    %v769 = vmul.f32 1.0, %v768
    %v771 = vrot.slane %v556, 1
    %v773 = vadd.f32 %v771, %v691
    %v774 = vxor.u32 %v773, 2147483648
    %v775 = vmul.f32 %v774, 1.442695
    %v776 = vpow.pop %v775
    %v777 = vadd.f32 %v776, 1.0
    %v778 = vrcp.pop %v777
    %v779 = vmul.f32 1.0, %v778
    %v780 = vmul.f32 %v769, %v760
    %v781 = vrot.slane %v556, 2
    %v783 = vadd.f32 %v781, %v780
    %v784 = vtanh.pop %v783
    %v785 = vsub.f32 %v553, %v784
    %v786 = vmul.f32 %v779, %v785
    %v787 = vadd.f32 %v784, %v786
    %788 = vst [vmem:[#allocation12 + $0x1] sm:$0x1] %v787
    %s789 = scalar_lea.vmem [#allocation3], 2
    %v790 = vld [vmem:[%s789] ss:$8 sm:$0x7]
    %v791 = vld [vmem:[#allocation11] sm:$0xff]
    %v792 = vld [vmem:[#allocation11 + $0x8] sm:$0xff]
    %v793 = vld [vmem:[#allocation11 + $0x10] sm:$0xff]
    %v794 = vld [vmem:[#allocation11 + $0x18] sm:$0xff]
    %v795 = vld [vmem:[#allocation11 + $0x20] sm:$0xff]
    %v796 = vld [vmem:[#allocation11 + $0x28] sm:$0xff]
    %v797 = vld [vmem:[#allocation11 + $0x30] sm:$0xff]
    %v798 = vld [vmem:[#allocation11 + $0x38] sm:$0xff]
    %v799 = vld [vmem:[#allocation11 + $0x40] sm:$0xff]
    %v800 = vld [vmem:[#allocation11 + $0x48] sm:$0xff]
    %v801 = vld [vmem:[#allocation11 + $0x50] sm:$0xff]
    %v802 = vld [vmem:[#allocation11 + $0x58] sm:$0xff]
    %v803 = vld [vmem:[#allocation11 + $0x60] sm:$0xff]
    %v804 = vld [vmem:[#allocation11 + $0x68] sm:$0xff]
    %v805 = vld [vmem:[#allocation11 + $0x70] sm:$0xff]
    %v806 = vld [vmem:[#allocation11 + $0x78] sm:$0xff]
    %v807 = vld [vmem:[#allocation11 + $0x80] sm:$0xff]
    %v808 = vld [vmem:[#allocation11 + $0x88] sm:$0xff]
    %v809 = vld [vmem:[#allocation11 + $0x90] sm:$0xff]
    %v810 = vld [vmem:[#allocation11 + $0x98] sm:$0xff]
    %v811 = vld [vmem:[#allocation11 + $0xa0] sm:$0xff]
    %v812 = vld [vmem:[#allocation11 + $0xa8] sm:$0xff]
    %v813 = vld [vmem:[#allocation11 + $0xb0] sm:$0xff]
    %v814 = vld [vmem:[#allocation11 + $0xb8] sm:$0xff]
    %v815 = vld [vmem:[#allocation11 + $0xc0] sm:$0xff]
    %v816 = vld [vmem:[#allocation11 + $0xc8] sm:$0xff]
    %v817 = vld [vmem:[#allocation11 + $0xd0] sm:$0xff]
    %v818 = vld [vmem:[#allocation11 + $0xd8] sm:$0xff]
    %v819 = vld [vmem:[#allocation11 + $0xe0] sm:$0xff]
    %v820 = vld [vmem:[#allocation11 + $0xe8] sm:$0xff]
    %v821 = vld [vmem:[#allocation11 + $0xf0] sm:$0xff]
    %v822 = vld [vmem:[#allocation11 + $0xf8] sm:$0xff]
    %v823 = vld [vmem:[#allocation11 + $0x100] sm:$0xff]
    %v824 = vld [vmem:[#allocation11 + $0x108] sm:$0xff]
    %v825 = vld [vmem:[#allocation11 + $0x110] sm:$0xff]
    %v826 = vld [vmem:[#allocation11 + $0x118] sm:$0xff]
    %v827 = vld [vmem:[#allocation11 + $0x120] sm:$0xff]
    %v828 = vld [vmem:[#allocation11 + $0x128] sm:$0xff]
    %v829 = vld [vmem:[#allocation11 + $0x130] sm:$0xff]
    %v830 = vld [vmem:[#allocation11 + $0x138] sm:$0xff]
    %v831 = vld [vmem:[#allocation11 + $0x140] sm:$0xff]
    %v832 = vld [vmem:[#allocation11 + $0x148] sm:$0xff]
    %v833 = vld [vmem:[#allocation11 + $0x150] sm:$0xff]
    %v834 = vld [vmem:[#allocation11 + $0x158] sm:$0xff]
    %v835 = vld [vmem:[#allocation11 + $0x160] sm:$0xff]
    %v836 = vld [vmem:[#allocation11 + $0x168] sm:$0xff]
    %v837 = vld [vmem:[#allocation11 + $0x170] sm:$0xff]
    %v838 = vld [vmem:[#allocation11 + $0x178] sm:$0xff]
    %v839 = vld [vmem:[%s5] sm:$0x7]
    %v841 = vlaneseq
    %v842 = vshrl.u32 %v841, 7
    %v843 = vsub.s32 0, %v842
    %v844 = vrot.slane %v839, %v843
    %v845 = vlaneseq
    %v846 = vshrl.u32 %v845, 7
    %v847 = vsub.s32 1, %v846
    %v848 = vrot.slane %v839, %v847
    %v849 = vlaneseq
    %v850 = vshrl.u32 %v849, 7
    %v851 = vsub.s32 2, %v850
    %v852 = vrot.slane %v839, %v851
    %856 = vmatprep.subr.mxu0 %v792
    %857 = vmatpush1.msra.mxu0 %v791
    %858 = vmatprep.subr.mxu0 %v795
    %859 = vmatpush1.msra.mxu0 %v794
    %860 = vmatprep.subr.mxu0 %v798
    %861 = vmatpush1.msra.mxu0 %v797
    %862 = vmatprep.subr.mxu0 %v801
    %863 = vmatpush1.msra.mxu0 %v800
    %864 = vmatprep.subr.mxu0 %v804
    %865 = vmatpush1.msra.mxu0 %v803
    %866 = vmatprep.subr.mxu0 %v807
    %867 = vmatpush1.msra.mxu0 %v806
    %868 = vmatprep.subr.mxu0 %v810
    %869 = vmatpush1.msra.mxu0 %v809
    %870 = vmatprep.subr.mxu0 %v813
    %871 = vmatpush1.msra.mxu0 %v812
    %872 = vmatprep.subr.mxu0 %v816
    %873 = vmatpush1.msra.mxu0 %v815
    %874 = vmatprep.subr.mxu0 %v819
    %875 = vmatpush1.msra.mxu0 %v818
    %876 = vmatprep.subr.mxu0 %v822
    %877 = vmatpush1.msra.mxu0 %v821
    %878 = vmatprep.subr.mxu0 %v825
    %879 = vmatpush1.msra.mxu0 %v824
    %880 = vmatprep.subr.mxu0 %v828
    %881 = vmatpush1.msra.mxu0 %v827
    %882 = vmatprep.subr.mxu0 %v831
    %883 = vmatpush1.msra.mxu0 %v830
    %884 = vmatprep.subr.mxu0 %v834
    %885 = vmatpush1.msra.mxu0 %v833
    %886 = vmatprep.subr.mxu0 %v837
    %887 = vmatpush1.msra.mxu0 %v836
    %888 = vmatprep.subr.mxu0 0.0
    %889 = vmatpush1.msra.mxu0 0.0
    %890 = vmatprep.subr.mxu0 0.0
    %891 = vmatpush1.msra.mxu0 0.0
    %892 = vmatprep.subr.mxu0 0.0
    %893 = vmatpush1.msra.mxu0 0.0
    %894 = vmatprep.subr.mxu0 0.0
    %895 = vmatpush1.msra.mxu0 0.0
    %896 = vmatprep.subr.mxu0 0.0
    %897 = vmatpush1.msra.mxu0 0.0
    %898 = vmatprep.subr.mxu0 0.0
    %899 = vmatpush1.msra.mxu0 0.0
    %900 = vmatprep.subr.mxu0 0.0
    %901 = vmatpush1.msra.mxu0 0.0
    %902 = vmatprep.subr.mxu0 0.0
    %903 = vmatpush1.msra.mxu0 0.0
    %904 = vmatprep.subr.mxu0 0.0
    %905 = vmatpush1.msra.mxu0 0.0
    %906 = vmatprep.subr.mxu0 0.0
    %907 = vmatpush1.msra.mxu0 0.0
    %908 = vmatprep.subr.mxu0 0.0
    %909 = vmatpush1.msra.mxu0 0.0
    %910 = vmatprep.subr.mxu0 0.0
    %911 = vmatpush1.msra.mxu0 0.0
    %912 = vmatprep.subr.mxu0 0.0
    %913 = vmatpush1.msra.mxu0 0.0
    %914 = vmatprep.subr.mxu0 0.0
    %915 = vmatpush1.msra.mxu0 0.0
    %916 = vmatprep.subr.mxu0 0.0
    %917 = vmatpush1.msra.mxu0 0.0
    %918 = vmatprep.subr.mxu0 0.0
    %919 = vmatpush1.msra.mxu0 0.0
    %920 = vmatprep.mubr.f32.mxu0 0.0
    %921 = vmatmul.mubr.f32.gmra.mrb[0].mxu0 %v787
    %v922 = vpop.f32.mrb[0].mxu0
    %v923 = vadd.f32 %v844, %v922
    %v924 = vpop.f32.mrb[0].mxu0
    %v925 = vadd.f32 %v848, %v924
    %926 = vdwg.mxu0
    %927 = vmatprep.subr.mxu0 0.0
    %928 = vmatpush1.msra.mxu0 %v793
    %929 = vmatprep.subr.mxu0 0.0
    %930 = vmatpush1.msra.mxu0 %v796
    %931 = vmatprep.subr.mxu0 0.0
    %932 = vmatpush1.msra.mxu0 %v799
    %933 = vmatprep.subr.mxu0 0.0
    %934 = vmatpush1.msra.mxu0 %v802
    %935 = vmatprep.subr.mxu0 0.0
    %936 = vmatpush1.msra.mxu0 %v805
    %937 = vmatprep.subr.mxu0 0.0
    %938 = vmatpush1.msra.mxu0 %v808
    %939 = vmatprep.subr.mxu0 0.0
    %940 = vmatpush1.msra.mxu0 %v811
    %941 = vmatprep.subr.mxu0 0.0
    %942 = vmatpush1.msra.mxu0 %v814
    %943 = vmatprep.subr.mxu0 0.0
    %944 = vmatpush1.msra.mxu0 %v817
    %945 = vmatprep.subr.mxu0 0.0
    %946 = vmatpush1.msra.mxu0 %v820
    %947 = vmatprep.subr.mxu0 0.0
    %948 = vmatpush1.msra.mxu0 %v823
    %949 = vmatprep.subr.mxu0 0.0
    %950 = vmatpush1.msra.mxu0 %v826
    %951 = vmatprep.subr.mxu0 0.0
    %952 = vmatpush1.msra.mxu0 %v829
    %953 = vmatprep.subr.mxu0 0.0
    %954 = vmatpush1.msra.mxu0 %v832
    %955 = vmatprep.subr.mxu0 0.0
    %956 = vmatpush1.msra.mxu0 %v835
    %957 = vmatprep.subr.mxu0 0.0
    %958 = vmatpush1.msra.mxu0 %v838
    %959 = vmatprep.subr.mxu0 0.0
    %960 = vmatpush1.msra.mxu0 0.0
    %961 = vmatprep.subr.mxu0 0.0
    %962 = vmatpush1.msra.mxu0 0.0
    %963 = vmatprep.subr.mxu0 0.0
    %964 = vmatpush1.msra.mxu0 0.0
    %965 = vmatprep.subr.mxu0 0.0
    %966 = vmatpush1.msra.mxu0 0.0
    %967 = vmatprep.subr.mxu0 0.0
    %968 = vmatpush1.msra.mxu0 0.0
    %969 = vmatprep.subr.mxu0 0.0
    %970 = vmatpush1.msra.mxu0 0.0
    %971 = vmatprep.subr.mxu0 0.0
    %972 = vmatpush1.msra.mxu0 0.0
    %973 = vmatprep.subr.mxu0 0.0
    %974 = vmatpush1.msra.mxu0 0.0
    %975 = vmatprep.subr.mxu0 0.0
    %976 = vmatpush1.msra.mxu0 0.0
    %977 = vmatprep.subr.mxu0 0.0
    %978 = vmatpush1.msra.mxu0 0.0
    %979 = vmatprep.subr.mxu0 0.0
    %980 = vmatpush1.msra.mxu0 0.0
    %981 = vmatprep.subr.mxu0 0.0
    %982 = vmatpush1.msra.mxu0 0.0
    %983 = vmatprep.subr.mxu0 0.0
    %984 = vmatpush1.msra.mxu0 0.0
    %985 = vmatprep.subr.mxu0 0.0
    %986 = vmatpush1.msra.mxu0 0.0
    %987 = vmatprep.subr.mxu0 0.0
    %988 = vmatpush1.msra.mxu0 0.0
    %989 = vmatprep.subr.mxu0 0.0
    %990 = vmatpush1.msra.mxu0 0.0
    %991 = vmatprep.mubr.f32.mxu0 0.0
    %992 = vmatmul.mubr.f32.gmra.mrb[0].mxu0 %v787
    %v993 = vpop.f32.mrb[0].mxu0
    %v994 = vadd.f32 %v852, %v993
    %v995 = vpop.f32.mrb[0].mxu0
    %996 = vdwg.mxu0
    %v997 = vadd.f32 %v790, %v923
    %v998 = vxor.u32 %v997, 2147483648
    %v999 = vmul.f32 %v998, 1.442695
    %v1000 = vpow.pop %v999
    %v1001 = vadd.f32 %v1000, 1.0
    %v1002 = vrcp.pop %v1001
    %v1003 = vmul.f32 1.0, %v1002
    %v1005 = vrot.slane %v790, 1
    %v1007 = vadd.f32 %v1005, %v925
    %v1008 = vxor.u32 %v1007, 2147483648
    %v1009 = vmul.f32 %v1008, 1.442695
    %v1010 = vpow.pop %v1009
    %v1011 = vadd.f32 %v1010, 1.0
    %v1012 = vrcp.pop %v1011
    %v1013 = vmul.f32 1.0, %v1012
    %v1014 = vmul.f32 %v1003, %v994
    %v1015 = vrot.slane %v790, 2
    %v1017 = vadd.f32 %v1015, %v1014
    %v1018 = vtanh.pop %v1017
    %v1019 = vsub.f32 %v787, %v1018
    %v1020 = vmul.f32 %v1013, %v1019
    %v1021 = vadd.f32 %v1018, %v1020
    %1022 = vst [vmem:[#allocation12 + $0x2] sm:$0x1] %v1021
    %s1023 = scalar_lea.vmem [#allocation3], 3
    %v1024 = vld [vmem:[%s1023] ss:$8 sm:$0x7]
    %v1025 = vld [vmem:[#allocation11] sm:$0xff]
    %v1026 = vld [vmem:[#allocation11 + $0x8] sm:$0xff]
    %v1027 = vld [vmem:[#allocation11 + $0x10] sm:$0xff]
    %v1028 = vld [vmem:[#allocation11 + $0x18] sm:$0xff]
    %v1029 = vld [vmem:[#allocation11 + $0x20] sm:$0xff]
    %v1030 = vld [vmem:[#allocation11 + $0x28] sm:$0xff]
    %v1031 = vld [vmem:[#allocation11 + $0x30] sm:$0xff]
    %v1032 = vld [vmem:[#allocation11 + $0x38] sm:$0xff]
    %v1033 = vld [vmem:[#allocation11 + $0x40] sm:$0xff]
    %v1034 = vld [vmem:[#allocation11 + $0x48] sm:$0xff]
    %v1035 = vld [vmem:[#allocation11 + $0x50] sm:$0xff]
    %v1036 = vld [vmem:[#allocation11 + $0x58] sm:$0xff]
    %v1037 = vld [vmem:[#allocation11 + $0x60] sm:$0xff]
    %v1038 = vld [vmem:[#allocation11 + $0x68] sm:$0xff]
    %v1039 = vld [vmem:[#allocation11 + $0x70] sm:$0xff]
    %v1040 = vld [vmem:[#allocation11 + $0x78] sm:$0xff]
    %v1041 = vld [vmem:[#allocation11 + $0x80] sm:$0xff]
    %v1042 = vld [vmem:[#allocation11 + $0x88] sm:$0xff]
    %v1043 = vld [vmem:[#allocation11 + $0x90] sm:$0xff]
    %v1044 = vld [vmem:[#allocation11 + $0x98] sm:$0xff]
    %v1045 = vld [vmem:[#allocation11 + $0xa0] sm:$0xff]
    %v1046 = vld [vmem:[#allocation11 + $0xa8] sm:$0xff]
    %v1047 = vld [vmem:[#allocation11 + $0xb0] sm:$0xff]
    %v1048 = vld [vmem:[#allocation11 + $0xb8] sm:$0xff]
    %v1049 = vld [vmem:[#allocation11 + $0xc0] sm:$0xff]
    %v1050 = vld [vmem:[#allocation11 + $0xc8] sm:$0xff]
    %v1051 = vld [vmem:[#allocation11 + $0xd0] sm:$0xff]
    %v1052 = vld [vmem:[#allocation11 + $0xd8] sm:$0xff]
    %v1053 = vld [vmem:[#allocation11 + $0xe0] sm:$0xff]
    %v1054 = vld [vmem:[#allocation11 + $0xe8] sm:$0xff]
    %v1055 = vld [vmem:[#allocation11 + $0xf0] sm:$0xff]
    %v1056 = vld [vmem:[#allocation11 + $0xf8] sm:$0xff]
    %v1057 = vld [vmem:[#allocation11 + $0x100] sm:$0xff]
    %v1058 = vld [vmem:[#allocation11 + $0x108] sm:$0xff]
    %v1059 = vld [vmem:[#allocation11 + $0x110] sm:$0xff]
    %v1060 = vld [vmem:[#allocation11 + $0x118] sm:$0xff]
    %v1061 = vld [vmem:[#allocation11 + $0x120] sm:$0xff]
    %v1062 = vld [vmem:[#allocation11 + $0x128] sm:$0xff]
    %v1063 = vld [vmem:[#allocation11 + $0x130] sm:$0xff]
    %v1064 = vld [vmem:[#allocation11 + $0x138] sm:$0xff]
    %v1065 = vld [vmem:[#allocation11 + $0x140] sm:$0xff]
    %v1066 = vld [vmem:[#allocation11 + $0x148] sm:$0xff]
    %v1067 = vld [vmem:[#allocation11 + $0x150] sm:$0xff]
    %v1068 = vld [vmem:[#allocation11 + $0x158] sm:$0xff]
    %v1069 = vld [vmem:[#allocation11 + $0x160] sm:$0xff]
    %v1070 = vld [vmem:[#allocation11 + $0x168] sm:$0xff]
    %v1071 = vld [vmem:[#allocation11 + $0x170] sm:$0xff]
    %v1072 = vld [vmem:[#allocation11 + $0x178] sm:$0xff]
    %v1073 = vld [vmem:[%s5] sm:$0x7]
    %v1075 = vlaneseq
    %v1076 = vshrl.u32 %v1075, 7
    %v1077 = vsub.s32 0, %v1076
    %v1078 = vrot.slane %v1073, %v1077
    %v1079 = vlaneseq
    %v1080 = vshrl.u32 %v1079, 7
    %v1081 = vsub.s32 1, %v1080
    %v1082 = vrot.slane %v1073, %v1081
    %v1083 = vlaneseq
    %v1084 = vshrl.u32 %v1083, 7
    %v1085 = vsub.s32 2, %v1084
    %v1086 = vrot.slane %v1073, %v1085
    %1090 = vmatprep.subr.mxu0 %v1026
    %1091 = vmatpush1.msra.mxu0 %v1025
    %1092 = vmatprep.subr.mxu0 %v1029
    %1093 = vmatpush1.msra.mxu0 %v1028
    %1094 = vmatprep.subr.mxu0 %v1032
    %1095 = vmatpush1.msra.mxu0 %v1031
    %1096 = vmatprep.subr.mxu0 %v1035
    %1097 = vmatpush1.msra.mxu0 %v1034
    %1098 = vmatprep.subr.mxu0 %v1038
    %1099 = vmatpush1.msra.mxu0 %v1037
    %1100 = vmatprep.subr.mxu0 %v1041
    %1101 = vmatpush1.msra.mxu0 %v1040
    %1102 = vmatprep.subr.mxu0 %v1044
    %1103 = vmatpush1.msra.mxu0 %v1043
    %1104 = vmatprep.subr.mxu0 %v1047
    %1105 = vmatpush1.msra.mxu0 %v1046
    %1106 = vmatprep.subr.mxu0 %v1050
    %1107 = vmatpush1.msra.mxu0 %v1049
    %1108 = vmatprep.subr.mxu0 %v1053
    %1109 = vmatpush1.msra.mxu0 %v1052
    %1110 = vmatprep.subr.mxu0 %v1056
    %1111 = vmatpush1.msra.mxu0 %v1055
    %1112 = vmatprep.subr.mxu0 %v1059
    %1113 = vmatpush1.msra.mxu0 %v1058
    %1114 = vmatprep.subr.mxu0 %v1062
    %1115 = vmatpush1.msra.mxu0 %v1061
    %1116 = vmatprep.subr.mxu0 %v1065
    %1117 = vmatpush1.msra.mxu0 %v1064
    %1118 = vmatprep.subr.mxu0 %v1068
    %1119 = vmatpush1.msra.mxu0 %v1067
    %1120 = vmatprep.subr.mxu0 %v1071
    %1121 = vmatpush1.msra.mxu0 %v1070
    %1122 = vmatprep.subr.mxu0 0.0
    %1123 = vmatpush1.msra.mxu0 0.0
    %1124 = vmatprep.subr.mxu0 0.0
    %1125 = vmatpush1.msra.mxu0 0.0
    %1126 = vmatprep.subr.mxu0 0.0
    %1127 = vmatpush1.msra.mxu0 0.0
    %1128 = vmatprep.subr.mxu0 0.0
    %1129 = vmatpush1.msra.mxu0 0.0
    %1130 = vmatprep.subr.mxu0 0.0
    %1131 = vmatpush1.msra.mxu0 0.0
    %1132 = vmatprep.subr.mxu0 0.0
    %1133 = vmatpush1.msra.mxu0 0.0
    %1134 = vmatprep.subr.mxu0 0.0
    %1135 = vmatpush1.msra.mxu0 0.0
    %1136 = vmatprep.subr.mxu0 0.0
    %1137 = vmatpush1.msra.mxu0 0.0
    %1138 = vmatprep.subr.mxu0 0.0
    %1139 = vmatpush1.msra.mxu0 0.0
    %1140 = vmatprep.subr.mxu0 0.0
    %1141 = vmatpush1.msra.mxu0 0.0
    %1142 = vmatprep.subr.mxu0 0.0
    %1143 = vmatpush1.msra.mxu0 0.0
    %1144 = vmatprep.subr.mxu0 0.0
    %1145 = vmatpush1.msra.mxu0 0.0
    %1146 = vmatprep.subr.mxu0 0.0
    %1147 = vmatpush1.msra.mxu0 0.0
    %1148 = vmatprep.subr.mxu0 0.0
    %1149 = vmatpush1.msra.mxu0 0.0
    %1150 = vmatprep.subr.mxu0 0.0
    %1151 = vmatpush1.msra.mxu0 0.0
    %1152 = vmatprep.subr.mxu0 0.0
    %1153 = vmatpush1.msra.mxu0 0.0
    %1154 = vmatprep.mubr.f32.mxu0 0.0
    %1155 = vmatmul.mubr.f32.gmra.mrb[0].mxu0 %v1021
    %v1156 = vpop.f32.mrb[0].mxu0
    %v1157 = vadd.f32 %v1078, %v1156
    %v1158 = vpop.f32.mrb[0].mxu0
    %v1159 = vadd.f32 %v1082, %v1158
    %1160 = vdwg.mxu0
    %1161 = vmatprep.subr.mxu0 0.0
    %1162 = vmatpush1.msra.mxu0 %v1027
    %1163 = vmatprep.subr.mxu0 0.0
    %1164 = vmatpush1.msra.mxu0 %v1030
    %1165 = vmatprep.subr.mxu0 0.0
    %1166 = vmatpush1.msra.mxu0 %v1033
    %1167 = vmatprep.subr.mxu0 0.0
    %1168 = vmatpush1.msra.mxu0 %v1036
    %1169 = vmatprep.subr.mxu0 0.0
    %1170 = vmatpush1.msra.mxu0 %v1039
    %1171 = vmatprep.subr.mxu0 0.0
    %1172 = vmatpush1.msra.mxu0 %v1042
    %1173 = vmatprep.subr.mxu0 0.0
    %1174 = vmatpush1.msra.mxu0 %v1045
    %1175 = vmatprep.subr.mxu0 0.0
    %1176 = vmatpush1.msra.mxu0 %v1048
    %1177 = vmatprep.subr.mxu0 0.0
    %1178 = vmatpush1.msra.mxu0 %v1051
    %1179 = vmatprep.subr.mxu0 0.0
    %1180 = vmatpush1.msra.mxu0 %v1054
    %1181 = vmatprep.subr.mxu0 0.0
    %1182 = vmatpush1.msra.mxu0 %v1057
    %1183 = vmatprep.subr.mxu0 0.0
    %1184 = vmatpush1.msra.mxu0 %v1060
    %1185 = vmatprep.subr.mxu0 0.0
    %1186 = vmatpush1.msra.mxu0 %v1063
    %1187 = vmatprep.subr.mxu0 0.0
    %1188 = vmatpush1.msra.mxu0 %v1066
    %1189 = vmatprep.subr.mxu0 0.0
    %1190 = vmatpush1.msra.mxu0 %v1069
    %1191 = vmatprep.subr.mxu0 0.0
    %1192 = vmatpush1.msra.mxu0 %v1072
    %1193 = vmatprep.subr.mxu0 0.0
    %1194 = vmatpush1.msra.mxu0 0.0
    %1195 = vmatprep.subr.mxu0 0.0
    %1196 = vmatpush1.msra.mxu0 0.0
    %1197 = vmatprep.subr.mxu0 0.0
    %1198 = vmatpush1.msra.mxu0 0.0
    %1199 = vmatprep.subr.mxu0 0.0
    %1200 = vmatpush1.msra.mxu0 0.0
    %1201 = vmatprep.subr.mxu0 0.0
    %1202 = vmatpush1.msra.mxu0 0.0
    %1203 = vmatprep.subr.mxu0 0.0
    %1204 = vmatpush1.msra.mxu0 0.0
    %1205 = vmatprep.subr.mxu0 0.0
    %1206 = vmatpush1.msra.mxu0 0.0
    %1207 = vmatprep.subr.mxu0 0.0
    %1208 = vmatpush1.msra.mxu0 0.0
    %1209 = vmatprep.subr.mxu0 0.0
    %1210 = vmatpush1.msra.mxu0 0.0
    %1211 = vmatprep.subr.mxu0 0.0
    %1212 = vmatpush1.msra.mxu0 0.0
    %1213 = vmatprep.subr.mxu0 0.0
    %1214 = vmatpush1.msra.mxu0 0.0
    %1215 = vmatprep.subr.mxu0 0.0
    %1216 = vmatpush1.msra.mxu0 0.0
    %1217 = vmatprep.subr.mxu0 0.0
    %1218 = vmatpush1.msra.mxu0 0.0
    %1219 = vmatprep.subr.mxu0 0.0
    %1220 = vmatpush1.msra.mxu0 0.0
    %1221 = vmatprep.subr.mxu0 0.0
    %1222 = vmatpush1.msra.mxu0 0.0
    %1223 = vmatprep.subr.mxu0 0.0
    %1224 = vmatpush1.msra.mxu0 0.0
    %1225 = vmatprep.mubr.f32.mxu0 0.0
    %1226 = vmatmul.mubr.f32.gmra.mrb[0].mxu0 %v1021
    %v1227 = vpop.f32.mrb[0].mxu0
    %v1228 = vadd.f32 %v1086, %v1227
    %v1229 = vpop.f32.mrb[0].mxu0
    %1230 = vdwg.mxu0
    %v1231 = vadd.f32 %v1024, %v1157
    %v1232 = vxor.u32 %v1231, 2147483648
    %v1233 = vmul.f32 %v1232, 1.442695
    %v1234 = vpow.pop %v1233
    %v1235 = vadd.f32 %v1234, 1.0
    %v1236 = vrcp.pop %v1235
    %v1237 = vmul.f32 1.0, %v1236
    %v1239 = vrot.slane %v1024, 1
    %v1241 = vadd.f32 %v1239, %v1159
    %v1242 = vxor.u32 %v1241, 2147483648
    %v1243 = vmul.f32 %v1242, 1.442695
    %v1244 = vpow.pop %v1243
    %v1245 = vadd.f32 %v1244, 1.0
    %v1246 = vrcp.pop %v1245
    %v1247 = vmul.f32 1.0, %v1246
    %v1248 = vmul.f32 %v1237, %v1228
    %v1249 = vrot.slane %v1024, 2
    %v1251 = vadd.f32 %v1249, %v1248
    %v1252 = vtanh.pop %v1251
    %v1253 = vsub.f32 %v1021, %v1252
    %v1254 = vmul.f32 %v1247, %v1253
    %v1255 = vadd.f32 %v1252, %v1254
    %1256 = vst [vmem:[#allocation12 + $0x3] sm:$0x1] %v1255
    %s1257 = scalar_lea.vmem [#allocation3], 4
    %v1258 = vld [vmem:[%s1257] ss:$8 sm:$0x7]
    %v1259 = vld [vmem:[#allocation11] sm:$0xff]
    %v1260 = vld [vmem:[#allocation11 + $0x8] sm:$0xff]
    %v1261 = vld [vmem:[#allocation11 + $0x10] sm:$0xff]
    %v1262 = vld [vmem:[#allocation11 + $0x18] sm:$0xff]
    %v1263 = vld [vmem:[#allocation11 + $0x20] sm:$0xff]
    %v1264 = vld [vmem:[#allocation11 + $0x28] sm:$0xff]
    %v1265 = vld [vmem:[#allocation11 + $0x30] sm:$0xff]
    %v1266 = vld [vmem:[#allocation11 + $0x38] sm:$0xff]
    %v1267 = vld [vmem:[#allocation11 + $0x40] sm:$0xff]
    %v1268 = vld [vmem:[#allocation11 + $0x48] sm:$0xff]
    %v1269 = vld [vmem:[#allocation11 + $0x50] sm:$0xff]
    %v1270 = vld [vmem:[#allocation11 + $0x58] sm:$0xff]
    %v1271 = vld [vmem:[#allocation11 + $0x60] sm:$0xff]
    %v1272 = vld [vmem:[#allocation11 + $0x68] sm:$0xff]
    %v1273 = vld [vmem:[#allocation11 + $0x70] sm:$0xff]
    %v1274 = vld [vmem:[#allocation11 + $0x78] sm:$0xff]
    %v1275 = vld [vmem:[#allocation11 + $0x80] sm:$0xff]
    %v1276 = vld [vmem:[#allocation11 + $0x88] sm:$0xff]
    %v1277 = vld [vmem:[#allocation11 + $0x90] sm:$0xff]
    %v1278 = vld [vmem:[#allocation11 + $0x98] sm:$0xff]
    %v1279 = vld [vmem:[#allocation11 + $0xa0] sm:$0xff]
    %v1280 = vld [vmem:[#allocation11 + $0xa8] sm:$0xff]
    %v1281 = vld [vmem:[#allocation11 + $0xb0] sm:$0xff]
    %v1282 = vld [vmem:[#allocation11 + $0xb8] sm:$0xff]
    %v1283 = vld [vmem:[#allocation11 + $0xc0] sm:$0xff]
    %v1284 = vld [vmem:[#allocation11 + $0xc8] sm:$0xff]
    %v1285 = vld [vmem:[#allocation11 + $0xd0] sm:$0xff]
    %v1286 = vld [vmem:[#allocation11 + $0xd8] sm:$0xff]
    %v1287 = vld [vmem:[#allocation11 + $0xe0] sm:$0xff]
    %v1288 = vld [vmem:[#allocation11 + $0xe8] sm:$0xff]
    %v1289 = vld [vmem:[#allocation11 + $0xf0] sm:$0xff]
    %v1290 = vld [vmem:[#allocation11 + $0xf8] sm:$0xff]
    %v1291 = vld [vmem:[#allocation11 + $0x100] sm:$0xff]
    %v1292 = vld [vmem:[#allocation11 + $0x108] sm:$0xff]
    %v1293 = vld [vmem:[#allocation11 + $0x110] sm:$0xff]
    %v1294 = vld [vmem:[#allocation11 + $0x118] sm:$0xff]
    %v1295 = vld [vmem:[#allocation11 + $0x120] sm:$0xff]
    %v1296 = vld [vmem:[#allocation11 + $0x128] sm:$0xff]
    %v1297 = vld [vmem:[#allocation11 + $0x130] sm:$0xff]
    %v1298 = vld [vmem:[#allocation11 + $0x138] sm:$0xff]
    %v1299 = vld [vmem:[#allocation11 + $0x140] sm:$0xff]
    %v1300 = vld [vmem:[#allocation11 + $0x148] sm:$0xff]
    %v1301 = vld [vmem:[#allocation11 + $0x150] sm:$0xff]
    %v1302 = vld [vmem:[#allocation11 + $0x158] sm:$0xff]
    %v1303 = vld [vmem:[#allocation11 + $0x160] sm:$0xff]
    %v1304 = vld [vmem:[#allocation11 + $0x168] sm:$0xff]
    %v1305 = vld [vmem:[#allocation11 + $0x170] sm:$0xff]
    %v1306 = vld [vmem:[#allocation11 + $0x178] sm:$0xff]
    %v1307 = vld [vmem:[%s5] sm:$0x7]
    %v1309 = vlaneseq
    %v1310 = vshrl.u32 %v1309, 7
    %v1311 = vsub.s32 0, %v1310
    %v1312 = vrot.slane %v1307, %v1311
    %v1313 = vlaneseq
    %v1314 = vshrl.u32 %v1313, 7
    %v1315 = vsub.s32 1, %v1314
    %v1316 = vrot.slane %v1307, %v1315
    %v1317 = vlaneseq
    %v1318 = vshrl.u32 %v1317, 7
    %v1319 = vsub.s32 2, %v1318
    %v1320 = vrot.slane %v1307, %v1319
    %1324 = vmatprep.subr.mxu0 %v1260
    %1325 = vmatpush1.msra.mxu0 %v1259
    %1326 = vmatprep.subr.mxu0 %v1263
    %1327 = vmatpush1.msra.mxu0 %v1262
    %1328 = vmatprep.subr.mxu0 %v1266
    %1329 = vmatpush1.msra.mxu0 %v1265
    %1330 = vmatprep.subr.mxu0 %v1269
    %1331 = vmatpush1.msra.mxu0 %v1268
    %1332 = vmatprep.subr.mxu0 %v1272
    %1333 = vmatpush1.msra.mxu0 %v1271
    %1334 = vmatprep.subr.mxu0 %v1275
    %1335 = vmatpush1.msra.mxu0 %v1274
    %1336 = vmatprep.subr.mxu0 %v1278
    %1337 = vmatpush1.msra.mxu0 %v1277
    %1338 = vmatprep.subr.mxu0 %v1281
    %1339 = vmatpush1.msra.mxu0 %v1280
    %1340 = vmatprep.subr.mxu0 %v1284
    %1341 = vmatpush1.msra.mxu0 %v1283
    %1342 = vmatprep.subr.mxu0 %v1287
    %1343 = vmatpush1.msra.mxu0 %v1286
    %1344 = vmatprep.subr.mxu0 %v1290
    %1345 = vmatpush1.msra.mxu0 %v1289
    %1346 = vmatprep.subr.mxu0 %v1293
    %1347 = vmatpush1.msra.mxu0 %v1292
    %1348 = vmatprep.subr.mxu0 %v1296
    %1349 = vmatpush1.msra.mxu0 %v1295
    %1350 = vmatprep.subr.mxu0 %v1299
    %1351 = vmatpush1.msra.mxu0 %v1298
    %1352 = vmatprep.subr.mxu0 %v1302
    %1353 = vmatpush1.msra.mxu0 %v1301
    %1354 = vmatprep.subr.mxu0 %v1305
    %1355 = vmatpush1.msra.mxu0 %v1304
    %1356 = vmatprep.subr.mxu0 0.0
    %1357 = vmatpush1.msra.mxu0 0.0
    %1358 = vmatprep.subr.mxu0 0.0
    %1359 = vmatpush1.msra.mxu0 0.0
    %1360 = vmatprep.subr.mxu0 0.0
    %1361 = vmatpush1.msra.mxu0 0.0
    %1362 = vmatprep.subr.mxu0 0.0
    %1363 = vmatpush1.msra.mxu0 0.0
    %1364 = vmatprep.subr.mxu0 0.0
    %1365 = vmatpush1.msra.mxu0 0.0
    %1366 = vmatprep.subr.mxu0 0.0
    %1367 = vmatpush1.msra.mxu0 0.0
    %1368 = vmatprep.subr.mxu0 0.0
    %1369 = vmatpush1.msra.mxu0 0.0
    %1370 = vmatprep.subr.mxu0 0.0
    %1371 = vmatpush1.msra.mxu0 0.0
    %1372 = vmatprep.subr.mxu0 0.0
    %1373 = vmatpush1.msra.mxu0 0.0
    %1374 = vmatprep.subr.mxu0 0.0
    %1375 = vmatpush1.msra.mxu0 0.0
    %1376 = vmatprep.subr.mxu0 0.0
    %1377 = vmatpush1.msra.mxu0 0.0
    %1378 = vmatprep.subr.mxu0 0.0
    %1379 = vmatpush1.msra.mxu0 0.0
    %1380 = vmatprep.subr.mxu0 0.0
    %1381 = vmatpush1.msra.mxu0 0.0
    %1382 = vmatprep.subr.mxu0 0.0
    %1383 = vmatpush1.msra.mxu0 0.0
    %1384 = vmatprep.subr.mxu0 0.0
    %1385 = vmatpush1.msra.mxu0 0.0
    %1386 = vmatprep.subr.mxu0 0.0
    %1387 = vmatpush1.msra.mxu0 0.0
    %1388 = vmatprep.mubr.f32.mxu0 0.0
    %1389 = vmatmul.mubr.f32.gmra.mrb[0].mxu0 %v1255
    %v1390 = vpop.f32.mrb[0].mxu0
    %v1391 = vadd.f32 %v1312, %v1390
    %v1392 = vpop.f32.mrb[0].mxu0
    %v1393 = vadd.f32 %v1316, %v1392
    %1394 = vdwg.mxu0
    %1395 = vmatprep.subr.mxu0 0.0
    %1396 = vmatpush1.msra.mxu0 %v1261
    %1397 = vmatprep.subr.mxu0 0.0
    %1398 = vmatpush1.msra.mxu0 %v1264
    %1399 = vmatprep.subr.mxu0 0.0
    %1400 = vmatpush1.msra.mxu0 %v1267
    %1401 = vmatprep.subr.mxu0 0.0
    %1402 = vmatpush1.msra.mxu0 %v1270
    %1403 = vmatprep.subr.mxu0 0.0
    %1404 = vmatpush1.msra.mxu0 %v1273
    %1405 = vmatprep.subr.mxu0 0.0
    %1406 = vmatpush1.msra.mxu0 %v1276
    %1407 = vmatprep.subr.mxu0 0.0
    %1408 = vmatpush1.msra.mxu0 %v1279
    %1409 = vmatprep.subr.mxu0 0.0
    %1410 = vmatpush1.msra.mxu0 %v1282
    %1411 = vmatprep.subr.mxu0 0.0
    %1412 = vmatpush1.msra.mxu0 %v1285
    %1413 = vmatprep.subr.mxu0 0.0
    %1414 = vmatpush1.msra.mxu0 %v1288
    %1415 = vmatprep.subr.mxu0 0.0
    %1416 = vmatpush1.msra.mxu0 %v1291
    %1417 = vmatprep.subr.mxu0 0.0
    %1418 = vmatpush1.msra.mxu0 %v1294
    %1419 = vmatprep.subr.mxu0 0.0
    %1420 = vmatpush1.msra.mxu0 %v1297
    %1421 = vmatprep.subr.mxu0 0.0
    %1422 = vmatpush1.msra.mxu0 %v1300
    %1423 = vmatprep.subr.mxu0 0.0
    %1424 = vmatpush1.msra.mxu0 %v1303
    %1425 = vmatprep.subr.mxu0 0.0
    %1426 = vmatpush1.msra.mxu0 %v1306
    %1427 = vmatprep.subr.mxu0 0.0
    %1428 = vmatpush1.msra.mxu0 0.0
    %1429 = vmatprep.subr.mxu0 0.0
    %1430 = vmatpush1.msra.mxu0 0.0
    %1431 = vmatprep.subr.mxu0 0.0
    %1432 = vmatpush1.msra.mxu0 0.0
    %1433 = vmatprep.subr.mxu0 0.0
    %1434 = vmatpush1.msra.mxu0 0.0
    %1435 = vmatprep.subr.mxu0 0.0
    %1436 = vmatpush1.msra.mxu0 0.0
    %1437 = vmatprep.subr.mxu0 0.0
    %1438 = vmatpush1.msra.mxu0 0.0
    %1439 = vmatprep.subr.mxu0 0.0
    %1440 = vmatpush1.msra.mxu0 0.0
    %1441 = vmatprep.subr.mxu0 0.0
    %1442 = vmatpush1.msra.mxu0 0.0
    %1443 = vmatprep.subr.mxu0 0.0
    %1444 = vmatpush1.msra.mxu0 0.0
    %1445 = vmatprep.subr.mxu0 0.0
    %1446 = vmatpush1.msra.mxu0 0.0
    %1447 = vmatprep.subr.mxu0 0.0
    %1448 = vmatpush1.msra.mxu0 0.0
    %1449 = vmatprep.subr.mxu0 0.0
    %1450 = vmatpush1.msra.mxu0 0.0
    %1451 = vmatprep.subr.mxu0 0.0
    %1452 = vmatpush1.msra.mxu0 0.0
    %1453 = vmatprep.subr.mxu0 0.0
    %1454 = vmatpush1.msra.mxu0 0.0
    %1455 = vmatprep.subr.mxu0 0.0
    %1456 = vmatpush1.msra.mxu0 0.0
    %1457 = vmatprep.subr.mxu0 0.0
    %1458 = vmatpush1.msra.mxu0 0.0
    %1459 = vmatprep.mubr.f32.mxu0 0.0
    %1460 = vmatmul.mubr.f32.gmra.mrb[0].mxu0 %v1255
    %v1461 = vpop.f32.mrb[0].mxu0
    %v1462 = vadd.f32 %v1320, %v1461
    %v1463 = vpop.f32.mrb[0].mxu0
    %1464 = vdwg.mxu0
    %v1465 = vadd.f32 %v1258, %v1391
    %v1466 = vxor.u32 %v1465, 2147483648
    %v1467 = vmul.f32 %v1466, 1.442695
    %v1468 = vpow.pop %v1467
    %v1469 = vadd.f32 %v1468, 1.0
    %v1470 = vrcp.pop %v1469
    %v1471 = vmul.f32 1.0, %v1470
    %v1473 = vrot.slane %v1258, 1
    %v1475 = vadd.f32 %v1473, %v1393
    %v1476 = vxor.u32 %v1475, 2147483648
    %v1477 = vmul.f32 %v1476, 1.442695
    %v1478 = vpow.pop %v1477
    %v1479 = vadd.f32 %v1478, 1.0
    %v1480 = vrcp.pop %v1479
    %v1481 = vmul.f32 1.0, %v1480
    %v1482 = vmul.f32 %v1471, %v1462
    %v1483 = vrot.slane %v1258, 2
    %v1485 = vadd.f32 %v1483, %v1482
    %v1486 = vtanh.pop %v1485
    %v1487 = vsub.f32 %v1255, %v1486
    %v1488 = vmul.f32 %v1481, %v1487
    %v1489 = vadd.f32 %v1486, %v1488
    %1490 = vst [vmem:[#allocation12 + $0x4] sm:$0x1] %v1489
    %s1491 = scalar_lea.vmem [#allocation3], 5
    %v1492 = vld [vmem:[%s1491] ss:$8 sm:$0x7]
    %v1493 = vld [vmem:[#allocation11] sm:$0xff]
    %v1494 = vld [vmem:[#allocation11 + $0x8] sm:$0xff]
    %v1495 = vld [vmem:[#allocation11 + $0x10] sm:$0xff]
    %v1496 = vld [vmem:[#allocation11 + $0x18] sm:$0xff]
    %v1497 = vld [vmem:[#allocation11 + $0x20] sm:$0xff]
    %v1498 = vld [vmem:[#allocation11 + $0x28] sm:$0xff]
    %v1499 = vld [vmem:[#allocation11 + $0x30] sm:$0xff]
    %v1500 = vld [vmem:[#allocation11 + $0x38] sm:$0xff]
    %v1501 = vld [vmem:[#allocation11 + $0x40] sm:$0xff]
    %v1502 = vld [vmem:[#allocation11 + $0x48] sm:$0xff]
    %v1503 = vld [vmem:[#allocation11 + $0x50] sm:$0xff]
    %v1504 = vld [vmem:[#allocation11 + $0x58] sm:$0xff]
    %v1505 = vld [vmem:[#allocation11 + $0x60] sm:$0xff]
    %v1506 = vld [vmem:[#allocation11 + $0x68] sm:$0xff]
    %v1507 = vld [vmem:[#allocation11 + $0x70] sm:$0xff]
    %v1508 = vld [vmem:[#allocation11 + $0x78] sm:$0xff]
    %v1509 = vld [vmem:[#allocation11 + $0x80] sm:$0xff]
    %v1510 = vld [vmem:[#allocation11 + $0x88] sm:$0xff]
    %v1511 = vld [vmem:[#allocation11 + $0x90] sm:$0xff]
    %v1512 = vld [vmem:[#allocation11 + $0x98] sm:$0xff]
    %v1513 = vld [vmem:[#allocation11 + $0xa0] sm:$0xff]
    %v1514 = vld [vmem:[#allocation11 + $0xa8] sm:$0xff]
    %v1515 = vld [vmem:[#allocation11 + $0xb0] sm:$0xff]
    %v1516 = vld [vmem:[#allocation11 + $0xb8] sm:$0xff]
    %v1517 = vld [vmem:[#allocation11 + $0xc0] sm:$0xff]
    %v1518 = vld [vmem:[#allocation11 + $0xc8] sm:$0xff]
    %v1519 = vld [vmem:[#allocation11 + $0xd0] sm:$0xff]
    %v1520 = vld [vmem:[#allocation11 + $0xd8] sm:$0xff]
    %v1521 = vld [vmem:[#allocation11 + $0xe0] sm:$0xff]
    %v1522 = vld [vmem:[#allocation11 + $0xe8] sm:$0xff]
    %v1523 = vld [vmem:[#allocation11 + $0xf0] sm:$0xff]
    %v1524 = vld [vmem:[#allocation11 + $0xf8] sm:$0xff]
    %v1525 = vld [vmem:[#allocation11 + $0x100] sm:$0xff]
    %v1526 = vld [vmem:[#allocation11 + $0x108] sm:$0xff]
    %v1527 = vld [vmem:[#allocation11 + $0x110] sm:$0xff]
    %v1528 = vld [vmem:[#allocation11 + $0x118] sm:$0xff]
    %v1529 = vld [vmem:[#allocation11 + $0x120] sm:$0xff]
    %v1530 = vld [vmem:[#allocation11 + $0x128] sm:$0xff]
    %v1531 = vld [vmem:[#allocation11 + $0x130] sm:$0xff]
    %v1532 = vld [vmem:[#allocation11 + $0x138] sm:$0xff]
    %v1533 = vld [vmem:[#allocation11 + $0x140] sm:$0xff]
    %v1534 = vld [vmem:[#allocation11 + $0x148] sm:$0xff]
    %v1535 = vld [vmem:[#allocation11 + $0x150] sm:$0xff]
    %v1536 = vld [vmem:[#allocation11 + $0x158] sm:$0xff]
    %v1537 = vld [vmem:[#allocation11 + $0x160] sm:$0xff]
    %v1538 = vld [vmem:[#allocation11 + $0x168] sm:$0xff]
    %v1539 = vld [vmem:[#allocation11 + $0x170] sm:$0xff]
    %v1540 = vld [vmem:[#allocation11 + $0x178] sm:$0xff]
    %v1541 = vld [vmem:[%s5] sm:$0x7]
    %v1543 = vlaneseq
    %v1544 = vshrl.u32 %v1543, 7
    %v1545 = vsub.s32 0, %v1544
    %v1546 = vrot.slane %v1541, %v1545
    %v1547 = vlaneseq
    %v1548 = vshrl.u32 %v1547, 7
    %v1549 = vsub.s32 1, %v1548
    %v1550 = vrot.slane %v1541, %v1549
    %v1551 = vlaneseq
    %v1552 = vshrl.u32 %v1551, 7
    %v1553 = vsub.s32 2, %v1552
    %v1554 = vrot.slane %v1541, %v1553
    %1558 = vmatprep.subr.mxu0 %v1494
    %1559 = vmatpush1.msra.mxu0 %v1493
    %1560 = vmatprep.subr.mxu0 %v1497
    %1561 = vmatpush1.msra.mxu0 %v1496
    %1562 = vmatprep.subr.mxu0 %v1500
    %1563 = vmatpush1.msra.mxu0 %v1499
    %1564 = vmatprep.subr.mxu0 %v1503
    %1565 = vmatpush1.msra.mxu0 %v1502
    %1566 = vmatprep.subr.mxu0 %v1506
    %1567 = vmatpush1.msra.mxu0 %v1505
    %1568 = vmatprep.subr.mxu0 %v1509
    %1569 = vmatpush1.msra.mxu0 %v1508
    %1570 = vmatprep.subr.mxu0 %v1512
    %1571 = vmatpush1.msra.mxu0 %v1511
    %1572 = vmatprep.subr.mxu0 %v1515
    %1573 = vmatpush1.msra.mxu0 %v1514
    %1574 = vmatprep.subr.mxu0 %v1518
    %1575 = vmatpush1.msra.mxu0 %v1517
    %1576 = vmatprep.subr.mxu0 %v1521
    %1577 = vmatpush1.msra.mxu0 %v1520
    %1578 = vmatprep.subr.mxu0 %v1524
    %1579 = vmatpush1.msra.mxu0 %v1523
    %1580 = vmatprep.subr.mxu0 %v1527
    %1581 = vmatpush1.msra.mxu0 %v1526
    %1582 = vmatprep.subr.mxu0 %v1530
    %1583 = vmatpush1.msra.mxu0 %v1529
    %1584 = vmatprep.subr.mxu0 %v1533
    %1585 = vmatpush1.msra.mxu0 %v1532
    %1586 = vmatprep.subr.mxu0 %v1536
    %1587 = vmatpush1.msra.mxu0 %v1535
    %1588 = vmatprep.subr.mxu0 %v1539
    %1589 = vmatpush1.msra.mxu0 %v1538
    %1590 = vmatprep.subr.mxu0 0.0
    %1591 = vmatpush1.msra.mxu0 0.0
    %1592 = vmatprep.subr.mxu0 0.0
    %1593 = vmatpush1.msra.mxu0 0.0
    %1594 = vmatprep.subr.mxu0 0.0
    %1595 = vmatpush1.msra.mxu0 0.0
    %1596 = vmatprep.subr.mxu0 0.0
    %1597 = vmatpush1.msra.mxu0 0.0
    %1598 = vmatprep.subr.mxu0 0.0
    %1599 = vmatpush1.msra.mxu0 0.0
    %1600 = vmatprep.subr.mxu0 0.0
    %1601 = vmatpush1.msra.mxu0 0.0
    %1602 = vmatprep.subr.mxu0 0.0
    %1603 = vmatpush1.msra.mxu0 0.0
    %1604 = vmatprep.subr.mxu0 0.0
    %1605 = vmatpush1.msra.mxu0 0.0
    %1606 = vmatprep.subr.mxu0 0.0
    %1607 = vmatpush1.msra.mxu0 0.0
    %1608 = vmatprep.subr.mxu0 0.0
    %1609 = vmatpush1.msra.mxu0 0.0
    %1610 = vmatprep.subr.mxu0 0.0
    %1611 = vmatpush1.msra.mxu0 0.0
    %1612 = vmatprep.subr.mxu0 0.0
    %1613 = vmatpush1.msra.mxu0 0.0
    %1614 = vmatprep.subr.mxu0 0.0
    %1615 = vmatpush1.msra.mxu0 0.0
    %1616 = vmatprep.subr.mxu0 0.0
    %1617 = vmatpush1.msra.mxu0 0.0
    %1618 = vmatprep.subr.mxu0 0.0
    %1619 = vmatpush1.msra.mxu0 0.0
    %1620 = vmatprep.subr.mxu0 0.0
    %1621 = vmatpush1.msra.mxu0 0.0
    %1622 = vmatprep.mubr.f32.mxu0 0.0
    %1623 = vmatmul.mubr.f32.gmra.mrb[0].mxu0 %v1489
    %v1624 = vpop.f32.mrb[0].mxu0
    %v1625 = vadd.f32 %v1546, %v1624
    %v1626 = vpop.f32.mrb[0].mxu0
    %v1627 = vadd.f32 %v1550, %v1626
    %1628 = vdwg.mxu0
    %1629 = vmatprep.subr.mxu0 0.0
    %1630 = vmatpush1.msra.mxu0 %v1495
    %1631 = vmatprep.subr.mxu0 0.0
    %1632 = vmatpush1.msra.mxu0 %v1498
    %1633 = vmatprep.subr.mxu0 0.0
    %1634 = vmatpush1.msra.mxu0 %v1501
    %1635 = vmatprep.subr.mxu0 0.0
    %1636 = vmatpush1.msra.mxu0 %v1504
    %1637 = vmatprep.subr.mxu0 0.0
    %1638 = vmatpush1.msra.mxu0 %v1507
    %1639 = vmatprep.subr.mxu0 0.0
    %1640 = vmatpush1.msra.mxu0 %v1510
    %1641 = vmatprep.subr.mxu0 0.0
    %1642 = vmatpush1.msra.mxu0 %v1513
    %1643 = vmatprep.subr.mxu0 0.0
    %1644 = vmatpush1.msra.mxu0 %v1516
    %1645 = vmatprep.subr.mxu0 0.0
    %1646 = vmatpush1.msra.mxu0 %v1519
    %1647 = vmatprep.subr.mxu0 0.0
    %1648 = vmatpush1.msra.mxu0 %v1522
    %1649 = vmatprep.subr.mxu0 0.0
    %1650 = vmatpush1.msra.mxu0 %v1525
    %1651 = vmatprep.subr.mxu0 0.0
    %1652 = vmatpush1.msra.mxu0 %v1528
    %1653 = vmatprep.subr.mxu0 0.0
    %1654 = vmatpush1.msra.mxu0 %v1531
    %1655 = vmatprep.subr.mxu0 0.0
    %1656 = vmatpush1.msra.mxu0 %v1534
    %1657 = vmatprep.subr.mxu0 0.0
    %1658 = vmatpush1.msra.mxu0 %v1537
    %1659 = vmatprep.subr.mxu0 0.0
    %1660 = vmatpush1.msra.mxu0 %v1540
    %1661 = vmatprep.subr.mxu0 0.0
    %1662 = vmatpush1.msra.mxu0 0.0
    %1663 = vmatprep.subr.mxu0 0.0
    %1664 = vmatpush1.msra.mxu0 0.0
    %1665 = vmatprep.subr.mxu0 0.0
    %1666 = vmatpush1.msra.mxu0 0.0
    %1667 = vmatprep.subr.mxu0 0.0
    %1668 = vmatpush1.msra.mxu0 0.0
    %1669 = vmatprep.subr.mxu0 0.0
    %1670 = vmatpush1.msra.mxu0 0.0
    %1671 = vmatprep.subr.mxu0 0.0
    %1672 = vmatpush1.msra.mxu0 0.0
    %1673 = vmatprep.subr.mxu0 0.0
    %1674 = vmatpush1.msra.mxu0 0.0
    %1675 = vmatprep.subr.mxu0 0.0
    %1676 = vmatpush1.msra.mxu0 0.0
    %1677 = vmatprep.subr.mxu0 0.0
    %1678 = vmatpush1.msra.mxu0 0.0
    %1679 = vmatprep.subr.mxu0 0.0
    %1680 = vmatpush1.msra.mxu0 0.0
    %1681 = vmatprep.subr.mxu0 0.0
    %1682 = vmatpush1.msra.mxu0 0.0
    %1683 = vmatprep.subr.mxu0 0.0
    %1684 = vmatpush1.msra.mxu0 0.0
    %1685 = vmatprep.subr.mxu0 0.0
    %1686 = vmatpush1.msra.mxu0 0.0
    %1687 = vmatprep.subr.mxu0 0.0
    %1688 = vmatpush1.msra.mxu0 0.0
    %1689 = vmatprep.subr.mxu0 0.0
    %1690 = vmatpush1.msra.mxu0 0.0
    %1691 = vmatprep.subr.mxu0 0.0
    %1692 = vmatpush1.msra.mxu0 0.0
    %1693 = vmatprep.mubr.f32.mxu0 0.0
    %1694 = vmatmul.mubr.f32.gmra.mrb[0].mxu0 %v1489
    %v1695 = vpop.f32.mrb[0].mxu0
    %v1696 = vadd.f32 %v1554, %v1695
    %v1697 = vpop.f32.mrb[0].mxu0
    %1698 = vdwg.mxu0
    %v1699 = vadd.f32 %v1492, %v1625
    %v1700 = vxor.u32 %v1699, 2147483648
    %v1701 = vmul.f32 %v1700, 1.442695
    %v1702 = vpow.pop %v1701
    %v1703 = vadd.f32 %v1702, 1.0
    %v1704 = vrcp.pop %v1703
    %v1705 = vmul.f32 1.0, %v1704
    %v1707 = vrot.slane %v1492, 1
    %v1709 = vadd.f32 %v1707, %v1627
    %v1710 = vxor.u32 %v1709, 2147483648
    %v1711 = vmul.f32 %v1710, 1.442695
    %v1712 = vpow.pop %v1711
    %v1713 = vadd.f32 %v1712, 1.0
    %v1714 = vrcp.pop %v1713
    %v1715 = vmul.f32 1.0, %v1714
    %v1716 = vmul.f32 %v1705, %v1696
    %v1717 = vrot.slane %v1492, 2
    %v1719 = vadd.f32 %v1717, %v1716
    %v1720 = vtanh.pop %v1719
    %v1721 = vsub.f32 %v1489, %v1720
    %v1722 = vmul.f32 %v1715, %v1721
    %v1723 = vadd.f32 %v1720, %v1722
    %1724 = vst [vmem:[#allocation12 + $0x5] sm:$0x1] %v1723
    %s1725 = scalar_lea.vmem [#allocation3], 6
    %v1726 = vld [vmem:[%s1725] ss:$8 sm:$0x7]
    %v1727 = vld [vmem:[#allocation11] sm:$0xff]
    %v1728 = vld [vmem:[#allocation11 + $0x8] sm:$0xff]
    %v1729 = vld [vmem:[#allocation11 + $0x10] sm:$0xff]
    %v1730 = vld [vmem:[#allocation11 + $0x18] sm:$0xff]
    %v1731 = vld [vmem:[#allocation11 + $0x20] sm:$0xff]
    %v1732 = vld [vmem:[#allocation11 + $0x28] sm:$0xff]
    %v1733 = vld [vmem:[#allocation11 + $0x30] sm:$0xff]
    %v1734 = vld [vmem:[#allocation11 + $0x38] sm:$0xff]
    %v1735 = vld [vmem:[#allocation11 + $0x40] sm:$0xff]
    %v1736 = vld [vmem:[#allocation11 + $0x48] sm:$0xff]
    %v1737 = vld [vmem:[#allocation11 + $0x50] sm:$0xff]
    %v1738 = vld [vmem:[#allocation11 + $0x58] sm:$0xff]
    %v1739 = vld [vmem:[#allocation11 + $0x60] sm:$0xff]
    %v1740 = vld [vmem:[#allocation11 + $0x68] sm:$0xff]
    %v1741 = vld [vmem:[#allocation11 + $0x70] sm:$0xff]
    %v1742 = vld [vmem:[#allocation11 + $0x78] sm:$0xff]
    %v1743 = vld [vmem:[#allocation11 + $0x80] sm:$0xff]
    %v1744 = vld [vmem:[#allocation11 + $0x88] sm:$0xff]
    %v1745 = vld [vmem:[#allocation11 + $0x90] sm:$0xff]
    %v1746 = vld [vmem:[#allocation11 + $0x98] sm:$0xff]
    %v1747 = vld [vmem:[#allocation11 + $0xa0] sm:$0xff]
    %v1748 = vld [vmem:[#allocation11 + $0xa8] sm:$0xff]
    %v1749 = vld [vmem:[#allocation11 + $0xb0] sm:$0xff]
    %v1750 = vld [vmem:[#allocation11 + $0xb8] sm:$0xff]
    %v1751 = vld [vmem:[#allocation11 + $0xc0] sm:$0xff]
    %v1752 = vld [vmem:[#allocation11 + $0xc8] sm:$0xff]
    %v1753 = vld [vmem:[#allocation11 + $0xd0] sm:$0xff]
    %v1754 = vld [vmem:[#allocation11 + $0xd8] sm:$0xff]
    %v1755 = vld [vmem:[#allocation11 + $0xe0] sm:$0xff]
    %v1756 = vld [vmem:[#allocation11 + $0xe8] sm:$0xff]
    %v1757 = vld [vmem:[#allocation11 + $0xf0] sm:$0xff]
    %v1758 = vld [vmem:[#allocation11 + $0xf8] sm:$0xff]
    %v1759 = vld [vmem:[#allocation11 + $0x100] sm:$0xff]
    %v1760 = vld [vmem:[#allocation11 + $0x108] sm:$0xff]
    %v1761 = vld [vmem:[#allocation11 + $0x110] sm:$0xff]
    %v1762 = vld [vmem:[#allocation11 + $0x118] sm:$0xff]
    %v1763 = vld [vmem:[#allocation11 + $0x120] sm:$0xff]
    %v1764 = vld [vmem:[#allocation11 + $0x128] sm:$0xff]
    %v1765 = vld [vmem:[#allocation11 + $0x130] sm:$0xff]
    %v1766 = vld [vmem:[#allocation11 + $0x138] sm:$0xff]
    %v1767 = vld [vmem:[#allocation11 + $0x140] sm:$0xff]
    %v1768 = vld [vmem:[#allocation11 + $0x148] sm:$0xff]
    %v1769 = vld [vmem:[#allocation11 + $0x150] sm:$0xff]
    %v1770 = vld [vmem:[#allocation11 + $0x158] sm:$0xff]
    %v1771 = vld [vmem:[#allocation11 + $0x160] sm:$0xff]
    %v1772 = vld [vmem:[#allocation11 + $0x168] sm:$0xff]
    %v1773 = vld [vmem:[#allocation11 + $0x170] sm:$0xff]
    %v1774 = vld [vmem:[#allocation11 + $0x178] sm:$0xff]
    %v1775 = vld [vmem:[%s5] sm:$0x7]
    %v1777 = vlaneseq
    %v1778 = vshrl.u32 %v1777, 7
    %v1779 = vsub.s32 0, %v1778
    %v1780 = vrot.slane %v1775, %v1779
    %v1781 = vlaneseq
    %v1782 = vshrl.u32 %v1781, 7
    %v1783 = vsub.s32 1, %v1782
    %v1784 = vrot.slane %v1775, %v1783
    %v1785 = vlaneseq
    %v1786 = vshrl.u32 %v1785, 7
    %v1787 = vsub.s32 2, %v1786
    %v1788 = vrot.slane %v1775, %v1787
    %1792 = vmatprep.subr.mxu0 %v1728
    %1793 = vmatpush1.msra.mxu0 %v1727
    %1794 = vmatprep.subr.mxu0 %v1731
    %1795 = vmatpush1.msra.mxu0 %v1730
    %1796 = vmatprep.subr.mxu0 %v1734
    %1797 = vmatpush1.msra.mxu0 %v1733
    %1798 = vmatprep.subr.mxu0 %v1737
    %1799 = vmatpush1.msra.mxu0 %v1736
    %1800 = vmatprep.subr.mxu0 %v1740
    %1801 = vmatpush1.msra.mxu0 %v1739
    %1802 = vmatprep.subr.mxu0 %v1743
    %1803 = vmatpush1.msra.mxu0 %v1742
    %1804 = vmatprep.subr.mxu0 %v1746
    %1805 = vmatpush1.msra.mxu0 %v1745
    %1806 = vmatprep.subr.mxu0 %v1749
    %1807 = vmatpush1.msra.mxu0 %v1748
    %1808 = vmatprep.subr.mxu0 %v1752
    %1809 = vmatpush1.msra.mxu0 %v1751
    %1810 = vmatprep.subr.mxu0 %v1755
    %1811 = vmatpush1.msra.mxu0 %v1754
    %1812 = vmatprep.subr.mxu0 %v1758
    %1813 = vmatpush1.msra.mxu0 %v1757
    %1814 = vmatprep.subr.mxu0 %v1761
    %1815 = vmatpush1.msra.mxu0 %v1760
    %1816 = vmatprep.subr.mxu0 %v1764
    %1817 = vmatpush1.msra.mxu0 %v1763
    %1818 = vmatprep.subr.mxu0 %v1767
    %1819 = vmatpush1.msra.mxu0 %v1766
    %1820 = vmatprep.subr.mxu0 %v1770
    %1821 = vmatpush1.msra.mxu0 %v1769
    %1822 = vmatprep.subr.mxu0 %v1773
    %1823 = vmatpush1.msra.mxu0 %v1772
    %1824 = vmatprep.subr.mxu0 0.0
    %1825 = vmatpush1.msra.mxu0 0.0
    %1826 = vmatprep.subr.mxu0 0.0
    %1827 = vmatpush1.msra.mxu0 0.0
    %1828 = vmatprep.subr.mxu0 0.0
    %1829 = vmatpush1.msra.mxu0 0.0
    %1830 = vmatprep.subr.mxu0 0.0
    %1831 = vmatpush1.msra.mxu0 0.0
    %1832 = vmatprep.subr.mxu0 0.0
    %1833 = vmatpush1.msra.mxu0 0.0
    %1834 = vmatprep.subr.mxu0 0.0
    %1835 = vmatpush1.msra.mxu0 0.0
    %1836 = vmatprep.subr.mxu0 0.0
    %1837 = vmatpush1.msra.mxu0 0.0
    %1838 = vmatprep.subr.mxu0 0.0
    %1839 = vmatpush1.msra.mxu0 0.0
    %1840 = vmatprep.subr.mxu0 0.0
    %1841 = vmatpush1.msra.mxu0 0.0
    %1842 = vmatprep.subr.mxu0 0.0
    %1843 = vmatpush1.msra.mxu0 0.0
    %1844 = vmatprep.subr.mxu0 0.0
    %1845 = vmatpush1.msra.mxu0 0.0
    %1846 = vmatprep.subr.mxu0 0.0
    %1847 = vmatpush1.msra.mxu0 0.0
    %1848 = vmatprep.subr.mxu0 0.0
    %1849 = vmatpush1.msra.mxu0 0.0
    %1850 = vmatprep.subr.mxu0 0.0
    %1851 = vmatpush1.msra.mxu0 0.0
    %1852 = vmatprep.subr.mxu0 0.0
    %1853 = vmatpush1.msra.mxu0 0.0
    %1854 = vmatprep.subr.mxu0 0.0
    %1855 = vmatpush1.msra.mxu0 0.0
    %1856 = vmatprep.mubr.f32.mxu0 0.0
    %1857 = vmatmul.mubr.f32.gmra.mrb[0].mxu0 %v1723
    %v1858 = vpop.f32.mrb[0].mxu0
    %v1859 = vadd.f32 %v1780, %v1858
    %v1860 = vpop.f32.mrb[0].mxu0
    %v1861 = vadd.f32 %v1784, %v1860
    %1862 = vdwg.mxu0
    %1863 = vmatprep.subr.mxu0 0.0
    %1864 = vmatpush1.msra.mxu0 %v1729
    %1865 = vmatprep.subr.mxu0 0.0
    %1866 = vmatpush1.msra.mxu0 %v1732
    %1867 = vmatprep.subr.mxu0 0.0
    %1868 = vmatpush1.msra.mxu0 %v1735
    %1869 = vmatprep.subr.mxu0 0.0
    %1870 = vmatpush1.msra.mxu0 %v1738
    %1871 = vmatprep.subr.mxu0 0.0
    %1872 = vmatpush1.msra.mxu0 %v1741
    %1873 = vmatprep.subr.mxu0 0.0
    %1874 = vmatpush1.msra.mxu0 %v1744
    %1875 = vmatprep.subr.mxu0 0.0
    %1876 = vmatpush1.msra.mxu0 %v1747
    %1877 = vmatprep.subr.mxu0 0.0
    %1878 = vmatpush1.msra.mxu0 %v1750
    %1879 = vmatprep.subr.mxu0 0.0
    %1880 = vmatpush1.msra.mxu0 %v1753
    %1881 = vmatprep.subr.mxu0 0.0
    %1882 = vmatpush1.msra.mxu0 %v1756
    %1883 = vmatprep.subr.mxu0 0.0
    %1884 = vmatpush1.msra.mxu0 %v1759
    %1885 = vmatprep.subr.mxu0 0.0
    %1886 = vmatpush1.msra.mxu0 %v1762
    %1887 = vmatprep.subr.mxu0 0.0
    %1888 = vmatpush1.msra.mxu0 %v1765
    %1889 = vmatprep.subr.mxu0 0.0
    %1890 = vmatpush1.msra.mxu0 %v1768
    %1891 = vmatprep.subr.mxu0 0.0
    %1892 = vmatpush1.msra.mxu0 %v1771
    %1893 = vmatprep.subr.mxu0 0.0
    %1894 = vmatpush1.msra.mxu0 %v1774
    %1895 = vmatprep.subr.mxu0 0.0
    %1896 = vmatpush1.msra.mxu0 0.0
    %1897 = vmatprep.subr.mxu0 0.0
    %1898 = vmatpush1.msra.mxu0 0.0
    %1899 = vmatprep.subr.mxu0 0.0
    %1900 = vmatpush1.msra.mxu0 0.0
    %1901 = vmatprep.subr.mxu0 0.0
    %1902 = vmatpush1.msra.mxu0 0.0
    %1903 = vmatprep.subr.mxu0 0.0
    %1904 = vmatpush1.msra.mxu0 0.0
    %1905 = vmatprep.subr.mxu0 0.0
    %1906 = vmatpush1.msra.mxu0 0.0
    %1907 = vmatprep.subr.mxu0 0.0
    %1908 = vmatpush1.msra.mxu0 0.0
    %1909 = vmatprep.subr.mxu0 0.0
    %1910 = vmatpush1.msra.mxu0 0.0
    %1911 = vmatprep.subr.mxu0 0.0
    %1912 = vmatpush1.msra.mxu0 0.0
    %1913 = vmatprep.subr.mxu0 0.0
    %1914 = vmatpush1.msra.mxu0 0.0
    %1915 = vmatprep.subr.mxu0 0.0
    %1916 = vmatpush1.msra.mxu0 0.0
    %1917 = vmatprep.subr.mxu0 0.0
    %1918 = vmatpush1.msra.mxu0 0.0
    %1919 = vmatprep.subr.mxu0 0.0
    %1920 = vmatpush1.msra.mxu0 0.0
    %1921 = vmatprep.subr.mxu0 0.0
    %1922 = vmatpush1.msra.mxu0 0.0
    %1923 = vmatprep.subr.mxu0 0.0
    %1924 = vmatpush1.msra.mxu0 0.0
    %1925 = vmatprep.subr.mxu0 0.0
    %1926 = vmatpush1.msra.mxu0 0.0
    %1927 = vmatprep.mubr.f32.mxu0 0.0
    %1928 = vmatmul.mubr.f32.gmra.mrb[0].mxu0 %v1723
    %v1929 = vpop.f32.mrb[0].mxu0
    %v1930 = vadd.f32 %v1788, %v1929
    %v1931 = vpop.f32.mrb[0].mxu0
    %1932 = vdwg.mxu0
    %v1933 = vadd.f32 %v1726, %v1859
    %v1934 = vxor.u32 %v1933, 2147483648
    %v1935 = vmul.f32 %v1934, 1.442695
    %v1936 = vpow.pop %v1935
    %v1937 = vadd.f32 %v1936, 1.0
    %v1938 = vrcp.pop %v1937
    %v1939 = vmul.f32 1.0, %v1938
    %v1941 = vrot.slane %v1726, 1
    %v1943 = vadd.f32 %v1941, %v1861
    %v1944 = vxor.u32 %v1943, 2147483648
    %v1945 = vmul.f32 %v1944, 1.442695
    %v1946 = vpow.pop %v1945
    %v1947 = vadd.f32 %v1946, 1.0
    %v1948 = vrcp.pop %v1947
    %v1949 = vmul.f32 1.0, %v1948
    %v1950 = vmul.f32 %v1939, %v1930
    %v1951 = vrot.slane %v1726, 2
    %v1953 = vadd.f32 %v1951, %v1950
    %v1954 = vtanh.pop %v1953
    %v1955 = vsub.f32 %v1723, %v1954
    %v1956 = vmul.f32 %v1949, %v1955
    %v1957 = vadd.f32 %v1954, %v1956
    %1958 = vst [vmem:[#allocation12 + $0x6] sm:$0x1] %v1957
    %s1959 = scalar_lea.vmem [#allocation3], 7
    %v1960 = vld [vmem:[%s1959] ss:$8 sm:$0x7]
    %v1961 = vld [vmem:[#allocation11] sm:$0xff]
    %v1962 = vld [vmem:[#allocation11 + $0x8] sm:$0xff]
    %v1963 = vld [vmem:[#allocation11 + $0x10] sm:$0xff]
    %v1964 = vld [vmem:[#allocation11 + $0x18] sm:$0xff]
    %v1965 = vld [vmem:[#allocation11 + $0x20] sm:$0xff]
    %v1966 = vld [vmem:[#allocation11 + $0x28] sm:$0xff]
    %v1967 = vld [vmem:[#allocation11 + $0x30] sm:$0xff]
    %v1968 = vld [vmem:[#allocation11 + $0x38] sm:$0xff]
    %v1969 = vld [vmem:[#allocation11 + $0x40] sm:$0xff]
    %v1970 = vld [vmem:[#allocation11 + $0x48] sm:$0xff]
    %v1971 = vld [vmem:[#allocation11 + $0x50] sm:$0xff]
    %v1972 = vld [vmem:[#allocation11 + $0x58] sm:$0xff]
    %v1973 = vld [vmem:[#allocation11 + $0x60] sm:$0xff]
    %v1974 = vld [vmem:[#allocation11 + $0x68] sm:$0xff]
    %v1975 = vld [vmem:[#allocation11 + $0x70] sm:$0xff]
    %v1976 = vld [vmem:[#allocation11 + $0x78] sm:$0xff]
    %v1977 = vld [vmem:[#allocation11 + $0x80] sm:$0xff]
    %v1978 = vld [vmem:[#allocation11 + $0x88] sm:$0xff]
    %v1979 = vld [vmem:[#allocation11 + $0x90] sm:$0xff]
    %v1980 = vld [vmem:[#allocation11 + $0x98] sm:$0xff]
    %v1981 = vld [vmem:[#allocation11 + $0xa0] sm:$0xff]
    %v1982 = vld [vmem:[#allocation11 + $0xa8] sm:$0xff]
    %v1983 = vld [vmem:[#allocation11 + $0xb0] sm:$0xff]
    %v1984 = vld [vmem:[#allocation11 + $0xb8] sm:$0xff]
    %v1985 = vld [vmem:[#allocation11 + $0xc0] sm:$0xff]
    %v1986 = vld [vmem:[#allocation11 + $0xc8] sm:$0xff]
    %v1987 = vld [vmem:[#allocation11 + $0xd0] sm:$0xff]
    %v1988 = vld [vmem:[#allocation11 + $0xd8] sm:$0xff]
    %v1989 = vld [vmem:[#allocation11 + $0xe0] sm:$0xff]
    %v1990 = vld [vmem:[#allocation11 + $0xe8] sm:$0xff]
    %v1991 = vld [vmem:[#allocation11 + $0xf0] sm:$0xff]
    %v1992 = vld [vmem:[#allocation11 + $0xf8] sm:$0xff]
    %v1993 = vld [vmem:[#allocation11 + $0x100] sm:$0xff]
    %v1994 = vld [vmem:[#allocation11 + $0x108] sm:$0xff]
    %v1995 = vld [vmem:[#allocation11 + $0x110] sm:$0xff]
    %v1996 = vld [vmem:[#allocation11 + $0x118] sm:$0xff]
    %v1997 = vld [vmem:[#allocation11 + $0x120] sm:$0xff]
    %v1998 = vld [vmem:[#allocation11 + $0x128] sm:$0xff]
    %v1999 = vld [vmem:[#allocation11 + $0x130] sm:$0xff]
    %v2000 = vld [vmem:[#allocation11 + $0x138] sm:$0xff]
    %v2001 = vld [vmem:[#allocation11 + $0x140] sm:$0xff]
    %v2002 = vld [vmem:[#allocation11 + $0x148] sm:$0xff]
    %v2003 = vld [vmem:[#allocation11 + $0x150] sm:$0xff]
    %v2004 = vld [vmem:[#allocation11 + $0x158] sm:$0xff]
    %v2005 = vld [vmem:[#allocation11 + $0x160] sm:$0xff]
    %v2006 = vld [vmem:[#allocation11 + $0x168] sm:$0xff]
    %v2007 = vld [vmem:[#allocation11 + $0x170] sm:$0xff]
    %v2008 = vld [vmem:[#allocation11 + $0x178] sm:$0xff]
    %v2009 = vld [vmem:[%s5] sm:$0x7]
    %v2011 = vlaneseq
    %v2012 = vshrl.u32 %v2011, 7
    %v2013 = vsub.s32 0, %v2012
    %v2014 = vrot.slane %v2009, %v2013
    %v2015 = vlaneseq
    %v2016 = vshrl.u32 %v2015, 7
    %v2017 = vsub.s32 1, %v2016
    %v2018 = vrot.slane %v2009, %v2017
    %v2019 = vlaneseq
    %v2020 = vshrl.u32 %v2019, 7
    %v2021 = vsub.s32 2, %v2020
    %v2022 = vrot.slane %v2009, %v2021
    %2026 = vmatprep.subr.mxu0 %v1962
    %2027 = vmatpush1.msra.mxu0 %v1961
    %2028 = vmatprep.subr.mxu0 %v1965
    %2029 = vmatpush1.msra.mxu0 %v1964
    %2030 = vmatprep.subr.mxu0 %v1968
    %2031 = vmatpush1.msra.mxu0 %v1967
    %2032 = vmatprep.subr.mxu0 %v1971
    %2033 = vmatpush1.msra.mxu0 %v1970
    %2034 = vmatprep.subr.mxu0 %v1974
    %2035 = vmatpush1.msra.mxu0 %v1973
    %2036 = vmatprep.subr.mxu0 %v1977
    %2037 = vmatpush1.msra.mxu0 %v1976
    %2038 = vmatprep.subr.mxu0 %v1980
    %2039 = vmatpush1.msra.mxu0 %v1979
    %2040 = vmatprep.subr.mxu0 %v1983
    %2041 = vmatpush1.msra.mxu0 %v1982
    %2042 = vmatprep.subr.mxu0 %v1986
    %2043 = vmatpush1.msra.mxu0 %v1985
    %2044 = vmatprep.subr.mxu0 %v1989
    %2045 = vmatpush1.msra.mxu0 %v1988
    %2046 = vmatprep.subr.mxu0 %v1992
    %2047 = vmatpush1.msra.mxu0 %v1991
    %2048 = vmatprep.subr.mxu0 %v1995
    %2049 = vmatpush1.msra.mxu0 %v1994
    %2050 = vmatprep.subr.mxu0 %v1998
    %2051 = vmatpush1.msra.mxu0 %v1997
    %2052 = vmatprep.subr.mxu0 %v2001
    %2053 = vmatpush1.msra.mxu0 %v2000
    %2054 = vmatprep.subr.mxu0 %v2004
    %2055 = vmatpush1.msra.mxu0 %v2003
    %2056 = vmatprep.subr.mxu0 %v2007
    %2057 = vmatpush1.msra.mxu0 %v2006
    %2058 = vmatprep.subr.mxu0 0.0
    %2059 = vmatpush1.msra.mxu0 0.0
    %2060 = vmatprep.subr.mxu0 0.0
    %2061 = vmatpush1.msra.mxu0 0.0
    %2062 = vmatprep.subr.mxu0 0.0
    %2063 = vmatpush1.msra.mxu0 0.0
    %2064 = vmatprep.subr.mxu0 0.0
    %2065 = vmatpush1.msra.mxu0 0.0
    %2066 = vmatprep.subr.mxu0 0.0
    %2067 = vmatpush1.msra.mxu0 0.0
    %2068 = vmatprep.subr.mxu0 0.0
    %2069 = vmatpush1.msra.mxu0 0.0
    %2070 = vmatprep.subr.mxu0 0.0
    %2071 = vmatpush1.msra.mxu0 0.0
    %2072 = vmatprep.subr.mxu0 0.0
    %2073 = vmatpush1.msra.mxu0 0.0
    %2074 = vmatprep.subr.mxu0 0.0
    %2075 = vmatpush1.msra.mxu0 0.0
    %2076 = vmatprep.subr.mxu0 0.0
    %2077 = vmatpush1.msra.mxu0 0.0
    %2078 = vmatprep.subr.mxu0 0.0
    %2079 = vmatpush1.msra.mxu0 0.0
    %2080 = vmatprep.subr.mxu0 0.0
    %2081 = vmatpush1.msra.mxu0 0.0
    %2082 = vmatprep.subr.mxu0 0.0
    %2083 = vmatpush1.msra.mxu0 0.0
    %2084 = vmatprep.subr.mxu0 0.0
    %2085 = vmatpush1.msra.mxu0 0.0
    %2086 = vmatprep.subr.mxu0 0.0
    %2087 = vmatpush1.msra.mxu0 0.0
    %2088 = vmatprep.subr.mxu0 0.0
    %2089 = vmatpush1.msra.mxu0 0.0
    %2090 = vmatprep.mubr.f32.mxu0 0.0
    %2091 = vmatmul.mubr.f32.gmra.mrb[0].mxu0 %v1957
    %v2092 = vpop.f32.mrb[0].mxu0
    %v2093 = vadd.f32 %v2014, %v2092
    %v2094 = vpop.f32.mrb[0].mxu0
    %v2095 = vadd.f32 %v2018, %v2094
    %2096 = vdwg.mxu0
    %2097 = vmatprep.subr.mxu0 0.0
    %2098 = vmatpush1.msra.mxu0 %v1963
    %2099 = vmatprep.subr.mxu0 0.0
    %2100 = vmatpush1.msra.mxu0 %v1966
    %2101 = vmatprep.subr.mxu0 0.0
    %2102 = vmatpush1.msra.mxu0 %v1969
    %2103 = vmatprep.subr.mxu0 0.0
    %2104 = vmatpush1.msra.mxu0 %v1972
    %2105 = vmatprep.subr.mxu0 0.0
    %2106 = vmatpush1.msra.mxu0 %v1975
    %2107 = vmatprep.subr.mxu0 0.0
    %2108 = vmatpush1.msra.mxu0 %v1978
    %2109 = vmatprep.subr.mxu0 0.0
    %2110 = vmatpush1.msra.mxu0 %v1981
    %2111 = vmatprep.subr.mxu0 0.0
    %2112 = vmatpush1.msra.mxu0 %v1984
    %2113 = vmatprep.subr.mxu0 0.0
    %2114 = vmatpush1.msra.mxu0 %v1987
    %2115 = vmatprep.subr.mxu0 0.0
    %2116 = vmatpush1.msra.mxu0 %v1990
    %2117 = vmatprep.subr.mxu0 0.0
    %2118 = vmatpush1.msra.mxu0 %v1993
    %2119 = vmatprep.subr.mxu0 0.0
    %2120 = vmatpush1.msra.mxu0 %v1996
    %2121 = vmatprep.subr.mxu0 0.0
    %2122 = vmatpush1.msra.mxu0 %v1999
    %2123 = vmatprep.subr.mxu0 0.0
    %2124 = vmatpush1.msra.mxu0 %v2002
    %2125 = vmatprep.subr.mxu0 0.0
    %2126 = vmatpush1.msra.mxu0 %v2005
    %2127 = vmatprep.subr.mxu0 0.0
    %2128 = vmatpush1.msra.mxu0 %v2008
    %2129 = vmatprep.subr.mxu0 0.0
    %2130 = vmatpush1.msra.mxu0 0.0
    %2131 = vmatprep.subr.mxu0 0.0
    %2132 = vmatpush1.msra.mxu0 0.0
    %2133 = vmatprep.subr.mxu0 0.0
    %2134 = vmatpush1.msra.mxu0 0.0
    %2135 = vmatprep.subr.mxu0 0.0
    %2136 = vmatpush1.msra.mxu0 0.0
    %2137 = vmatprep.subr.mxu0 0.0
    %2138 = vmatpush1.msra.mxu0 0.0
    %2139 = vmatprep.subr.mxu0 0.0
    %2140 = vmatpush1.msra.mxu0 0.0
    %2141 = vmatprep.subr.mxu0 0.0
    %2142 = vmatpush1.msra.mxu0 0.0
    %2143 = vmatprep.subr.mxu0 0.0
    %2144 = vmatpush1.msra.mxu0 0.0
    %2145 = vmatprep.subr.mxu0 0.0
    %2146 = vmatpush1.msra.mxu0 0.0
    %2147 = vmatprep.subr.mxu0 0.0
    %2148 = vmatpush1.msra.mxu0 0.0
    %2149 = vmatprep.subr.mxu0 0.0
    %2150 = vmatpush1.msra.mxu0 0.0
    %2151 = vmatprep.subr.mxu0 0.0
    %2152 = vmatpush1.msra.mxu0 0.0
    %2153 = vmatprep.subr.mxu0 0.0
    %2154 = vmatpush1.msra.mxu0 0.0
    %2155 = vmatprep.subr.mxu0 0.0
    %2156 = vmatpush1.msra.mxu0 0.0
    %2157 = vmatprep.subr.mxu0 0.0
    %2158 = vmatpush1.msra.mxu0 0.0
    %2159 = vmatprep.subr.mxu0 0.0
    %2160 = vmatpush1.msra.mxu0 0.0
    %2161 = vmatprep.mubr.f32.mxu0 0.0
    %2162 = vmatmul.mubr.f32.gmra.mrb[0].mxu0 %v1957
    %v2163 = vpop.f32.mrb[0].mxu0
    %v2164 = vadd.f32 %v2022, %v2163
    %v2165 = vpop.f32.mrb[0].mxu0
    %2166 = vdwg.mxu0
    %v2167 = vadd.f32 %v1960, %v2093
    %v2168 = vxor.u32 %v2167, 2147483648
    %v2169 = vmul.f32 %v2168, 1.442695
    %v2170 = vpow.pop %v2169
    %v2171 = vadd.f32 %v2170, 1.0
    %v2172 = vrcp.pop %v2171
    %v2173 = vmul.f32 1.0, %v2172
    %v2175 = vrot.slane %v1960, 1
    %v2177 = vadd.f32 %v2175, %v2095
    %v2178 = vxor.u32 %v2177, 2147483648
    %v2179 = vmul.f32 %v2178, 1.442695
    %v2180 = vpow.pop %v2179
    %v2181 = vadd.f32 %v2180, 1.0
    %v2182 = vrcp.pop %v2181
    %v2183 = vmul.f32 1.0, %v2182
    %v2184 = vmul.f32 %v2173, %v2164
    %v2185 = vrot.slane %v1960, 2
    %v2187 = vadd.f32 %v2185, %v2184
    %v2188 = vtanh.pop %v2187
    %v2189 = vsub.f32 %v1957, %v2188
    %v2190 = vmul.f32 %v2183, %v2189
    %v2191 = vadd.f32 %v2188, %v2190
    %2192 = vst [vmem:[#allocation12 + $0x7] sm:$0x1] %v2191
    // Predicated region
    $region46: #{tpu_custom_call.1} parent=1 // pred_check
      _
    $region47: #{tpu_custom_call.1} parent=1 // pred_check_branch
      %2194 = sbr.rel (0) target = $region49
    $region48: #{tpu_custom_call.1} parent=1 // pred_region
      %s2196 = ssub.s32 128, 128
      %2197 = vsyncadd [#allocation6], %s2196
      %s2199 = sshll.u32 [#allocation12], 4
      %s2200 = int_to_ptr.vmem [resolvable:$true] %s2199
      %2202 = dma.vmem_to_hbm [thread:$0]  %s2200, 128, %s7, [#allocation6]
    $region49: #{tpu_custom_call.1} parent=1 // pred_fallthru
      _
    // Predicated region
    $region50: #{tpu_custom_call.1} parent=1 // pred_check
      _
    $region51: #{tpu_custom_call.1} parent=1 // pred_check_branch
      %2204 = sbr.rel (0) target = $region53
    $region52: #{tpu_custom_call.1} parent=1 // pred_region
      %2205 = dma.done [#allocation6], 128
    $region53: #{tpu_custom_call.1} parent=1 // pred_fallthru
      _
    %2206 = vsyncpa [#allocation5], 1
    %2207 = vsyncpa [#allocation10], 1
    %2208 = vsyncpa [#allocation6], 1
    %2209 = vsyncpa [#allocation7], 1

</llo_original>
